<compile_context>
chip_gen: v6e
topology: v6e:2x2x1
jax: 0.10.0
libtpu: 0.0.40
codegen_flags: <defaults>
</compile_context>

<pallas_src>
import math

import jax
import jax.numpy as jnp
from jax.experimental import pallas as pl

# ---------------- model hyper-parameters ---------------------------------------
B, S = 2, 8
BS = B * S
EMBED = 32                 # embed_dim == vocab_size == input_dim (required by the x + P broadcast)
HEADS = 4
HEAD_DIM = EMBED // HEADS
MIDDLE = 64
NUM_LAYERS = 2
f32 = jnp.float32
bf16 = jnp.bfloat16


# ---------------- in-kernel math helpers ----------------------------------------
def _gelu_tanh(x):
    # tanh-approx GELU (EUP slot); |err| vs exact erf-GELU < 3e-3 at these magnitudes.
    c = math.sqrt(2.0 / math.pi)
    return 0.5 * x * (1.0 + jnp.tanh(c * (x + 0.044715 * x * x * x)))


def _ln_stats(x, eps):
    # var = E[x^2] - mu^2 lets the two cross-lane reductions overlap; clamp at 0
    # to guard the cancellation corner case before rsqrt.
    mu = jnp.mean(x, axis=-1, keepdims=True)
    ms = jnp.mean(x * x, axis=-1, keepdims=True)
    var = jnp.maximum(ms - mu * mu, 0.0)
    return (x - mu) * jax.lax.rsqrt(var + eps)


# ---------------- the fused Pallas kernel (single invocation, no grid) -----------
def fused_encoder_kernel(x_ref, peb_ref, mask_ref, wt_ref, lng_ref, lnb_ref,
                         wqkv_ref, bqkv_ref, wo_ref, bo_ref,
                         w1_ref, b1_ref, w2_ref, b2_ref, o_ref):
    x = x_ref[...]                                       # (B*S, EMBED) f32
    amask = mask_ref[...]                                # (B*S, B*S): 0 within batch, -1e30 across

    # ---- Embeddings: LN_1e-12( Linear(x) + PositionalEncoding(x) ) ----
    # PositionalEncoding(x) = x + P (eval dropout = id); P and the Linear bias are
    # pre-folded into peb = tile(P, B) + bt, x stays f32 on the identity path.
    tok = jnp.dot(x.astype(bf16), wt_ref[...], preferred_element_type=f32)
    h = _ln_stats(tok + x + peb_ref[...], 1e-12) * lng_ref[...] + lnb_ref[...]

    scale = 1.0 / math.sqrt(HEAD_DIM)
    for l in range(NUM_LAYERS):                          # static unroll over layers
        # ---- multi-head self-attention (LN1 affine pre-folded into wqkv/bqkv) ----
        hn = _ln_stats(h, 1e-5)
        qkv = jnp.dot(hn.astype(bf16), wqkv_ref[l],
                      preferred_element_type=f32) + bqkv_ref[l]          # (16, 96)
        ctx_heads = []
        for hh in range(HEADS):                          # static head slices; batches share one matmul
            q = qkv[:, hh * HEAD_DIM:(hh + 1) * HEAD_DIM]
            k = qkv[:, EMBED + hh * HEAD_DIM:EMBED + (hh + 1) * HEAD_DIM]
            v = qkv[:, 2 * EMBED + hh * HEAD_DIM:2 * EMBED + (hh + 1) * HEAD_DIM]
            s = jnp.einsum('qd,kd->qk', q.astype(bf16), k.astype(bf16),
                           preferred_element_type=f32) * scale + amask   # (16, 16), block-diag
            s = s - jnp.max(s, axis=-1, keepdims=True)
            e = jnp.exp(s)
            p = e * pl.reciprocal(jnp.sum(e, axis=-1, keepdims=True), approx=True)
            ctx_heads.append(jnp.dot(p.astype(bf16), v.astype(bf16),
                                     preferred_element_type=f32))        # (16, HEAD_DIM)
        cat = jnp.concatenate(ctx_heads, axis=-1)                        # (16, EMBED)
        attn = jnp.dot(cat.astype(bf16), wo_ref[l],
                       preferred_element_type=f32) + bo_ref[l]
        h = h + attn

        # ---- feed-forward (LN2 affine pre-folded into w1/b1), dropout = identity ----
        hn2 = _ln_stats(h, 1e-5)
        ff = jnp.dot(hn2.astype(bf16), w1_ref[l],
                     preferred_element_type=f32) + b1_ref[l]
        ff = _gelu_tanh(ff)
        ff = jnp.dot(ff.astype(bf16), w2_ref[l],
                     preferred_element_type=f32) + b2_ref[l]
        h = h + ff

    o_ref[...] = h


# ---------------- one-time parameter folding (init-time, NOT per call) -----------
def prepare_kernel_params(emb_p, layer_p, P):
    # PositionalEncoding + token bias -> single additive constant (B*S, EMBED).
    peb = jnp.tile(P, (B, 1)) + emb_p['bt']

    # LN1 affine folded into the QKV projection: (xn*g + b) @ W = xn @ (g[:,None]*W) + b@W.
    g1 = jnp.swapaxes(layer_p['ln1_g'], 1, 2)                       # (L, E, 1)
    wqkv = (layer_p['wqkv'] * g1).astype(bf16)
    bqkv = layer_p['bqkv'] + jnp.einsum('lxe,led->lxd', layer_p['ln1_b'], layer_p['wqkv'])

    # LN2 affine folded into the first FFN matmul.
    g2 = jnp.swapaxes(layer_p['ln2_g'], 1, 2)                       # (L, E, 1)
    w1 = (layer_p['w1'] * g2).astype(bf16)
    b1 = layer_p['b1'] + jnp.einsum('lxe,lem->lxm', layer_p['ln2_b'], layer_p['w1'])

    # Block-diagonal cross-batch attention mask (both batches share one score matmul).
    row_b = jnp.arange(BS, dtype=jnp.int32) // S
    amask = jnp.where(row_b[:, None] == row_b[None, :], 0.0, -1e30).astype(f32)

    return dict(
        peb=peb, amask=amask,
        wt=emb_p['wt'].astype(bf16), lng=emb_p['ln_g'], lnb=emb_p['ln_b'],
        wqkv=wqkv, bqkv=bqkv,
        wo=layer_p['wo'].astype(bf16), bo=layer_p['bo'],
        w1=w1, b1=b1,
        w2=layer_p['w2'].astype(bf16), b2=layer_p['b2'],
    )


# ---------------- wrapper --------------------------------------------------------
def transformer_encoder(x, kp):
    x2d = x.reshape(BS, EMBED)                                      # free bitcast
    out2d = pl.pallas_call(
        fused_encoder_kernel,
        out_shape=jax.ShapeDtypeStruct((BS, EMBED), f32),
        # no grid / BlockSpecs: single invocation, whole arrays resident in VMEM
        # (total footprint ~60 KB weights + 2 KB activation).
    )(x2d, kp['peb'], kp['amask'], kp['wt'], kp['lng'], kp['lnb'],
      kp['wqkv'], kp['bqkv'], kp['wo'], kp['bo'],
      kp['w1'], kp['b1'], kp['w2'], kp['b2'])
    return out2d.reshape(B, S, EMBED)                               # free bitcast


# ---------------- positional encoding & parameters (glue, matches torch init) ----
def positional_encoding(seq_len, num_hiddens):
    # Matches the given torch module exactly, including the cos channel using
    # arange(0, H-1, 2) / (H-1) (intentionally kept; differs from the common d2l form).
    pos = jnp.arange(seq_len, dtype=f32).reshape(-1, 1)
    Xs = pos / jnp.power(10000.0, jnp.arange(0, num_hiddens, 2, dtype=f32) / num_hiddens)
    Xc = pos / jnp.power(10000.0, jnp.arange(0, num_hiddens - 1, 2, dtype=f32) / (num_hiddens - 1))
    P = jnp.zeros((seq_len, num_hiddens), f32)
    P = P.at[:, 0::2].set(jnp.sin(Xs))
    P = P.at[:, 1::2].set(jnp.cos(Xc))
    return P


def init_params(key):
    keys = iter(jax.random.split(key, 64))

    def nrm(shape, scale=0.05):
        return scale * jax.random.normal(next(keys), shape, dtype=f32)

    L = NUM_LAYERS
    emb = dict(
        wt=nrm((EMBED, EMBED)), bt=nrm((1, EMBED)),
        ln_g=1.0 + nrm((1, EMBED)), ln_b=nrm((1, EMBED)),
    )
    layers = dict(
        ln1_g=1.0 + nrm((L, 1, EMBED)), ln1_b=nrm((L, 1, EMBED)),
        wqkv=nrm((L, EMBED, 3 * EMBED)), bqkv=nrm((L, 1, 3 * EMBED)),
        wo=nrm((L, EMBED, EMBED)), bo=nrm((L, 1, EMBED)),
        ln2_g=1.0 + nrm((L, 1, EMBED)), ln2_b=nrm((L, 1, EMBED)),
        w1=nrm((L, EMBED, MIDDLE)), b1=nrm((L, 1, MIDDLE)),
        w2=nrm((L, MIDDLE, EMBED)), b2=nrm((L, 1, EMBED)),
    )
    return emb, layers


# ---------------- pure-JAX reference (unfolded params, HIGHEST precision) --------
def _ref_ln(x, g, b, eps):
    mu = jnp.mean(x, axis=-1, keepdims=True)
    var = jnp.mean((x - mu) ** 2, axis=-1, keepdims=True)
    return (x - mu) / jnp.sqrt(var + eps) * g + b


def reference_forward(x, emb_p, layer_p, P):
    hp = jax.lax.Precision.HIGHEST
    tok = jnp.einsum('bsd,de->bse', x, emb_p['wt'], precision=hp) + emb_p['bt']
    h = _ref_ln(tok + (x + P), emb_p['ln_g'], emb_p['ln_b'], 1e-12)
    for l in range(NUM_LAYERS):
        hn = _ref_ln(h, layer_p['ln1_g'][l], layer_p['ln1_b'][l], 1e-5)
        wqkv, bqkv = layer_p['wqkv'][l], layer_p['bqkv'][l]
        heads = []
        for i in range(HEADS):
            qs = slice(i * HEAD_DIM, (i + 1) * HEAD_DIM)
            ks = slice(EMBED + i * HEAD_DIM, EMBED + (i + 1) * HEAD_DIM)
            vs = slice(2 * EMBED + i * HEAD_DIM, 2 * EMBED + (i + 1) * HEAD_DIM)
            q = jnp.einsum('bsd,de->bse', hn, wqkv[:, qs], precision=hp) + bqkv[:, qs]
            k = jnp.einsum('bsd,de->bse', hn, wqkv[:, ks], precision=hp) + bqkv[:, ks]
            v = jnp.einsum('bsd,de->bse', hn, wqkv[:, vs], precision=hp) + bqkv[:, vs]
            sc = jnp.einsum('bqe,bke->bqk', q, k, precision=hp) / math.sqrt(HEAD_DIM)
            w = jax.nn.softmax(sc, axis=-1)
            heads.append(jnp.einsum('bqk,bke->bqe', w, v, precision=hp))
        cat = jnp.concatenate(heads, axis=-1)
        h = h + (jnp.einsum('bsd,de->bse', cat, layer_p['wo'][l], precision=hp)
                 + layer_p['bo'][l])
        hn2 = _ref_ln(h, layer_p['ln2_g'][l], layer_p['ln2_b'][l], 1e-5)
        ff = jnp.einsum('bsd,dm->bsm', hn2, layer_p['w1'][l], precision=hp) + layer_p['b1'][l]
        ff = 0.5 * ff * (1.0 + jax.scipy.special.erf(ff / math.sqrt(2.0)))
        ff = jnp.einsum('bsm,md->bsd', ff, layer_p['w2'][l], precision=hp) + layer_p['b2'][l]
        h = h + ff
    return h


# ---------------- main ------------------------------------------------------------
if __name__ == "__main__":
    key = jax.random.PRNGKey(0)
    kx, kp = jax.random.split(key)
    x = jax.random.normal(kx, (B, S, EMBED), dtype=f32)
    emb_params, layer_params = init_params(kp)
    P = positional_encoding(S, EMBED)

    kernel_params = prepare_kernel_params(emb_params, layer_params, P)  # one-time fold
    out = transformer_encoder(x, kernel_params)
    out = jax.block_until_ready(out)

    ref = reference_forward(x, emb_params, layer_params, P)
    assert out.shape == (B, S, EMBED)
    assert bool(jnp.all(jnp.isfinite(out)))
    max_err = float(jnp.max(jnp.abs(out - ref)))
    assert max_err < 5e-2, f"kernel/reference mismatch, max abs err = {max_err}"
    print("KERNEL_OK")
</pallas_src>

<mosaic_0001>
module attributes {stable_mosaic.version = 11 : i64} {
  func.func @fused_encoder_kernel(%arg0: memref<16x32xf32, #tpu.memory_space<vmem>>, %arg1: memref<16x32xf32, #tpu.memory_space<vmem>>, %arg2: memref<16x16xf32, #tpu.memory_space<vmem>>, %arg3: memref<32x32xbf16, #tpu.memory_space<vmem>>, %arg4: memref<1x32xf32, #tpu.memory_space<vmem>>, %arg5: memref<1x32xf32, #tpu.memory_space<vmem>>, %arg6: memref<2x32x96xbf16, #tpu.memory_space<vmem>>, %arg7: memref<2x1x96xf32, #tpu.memory_space<vmem>>, %arg8: memref<2x32x32xbf16, #tpu.memory_space<vmem>>, %arg9: memref<2x1x32xf32, #tpu.memory_space<vmem>>, %arg10: memref<2x32x64xbf16, #tpu.memory_space<vmem>>, %arg11: memref<2x1x64xf32, #tpu.memory_space<vmem>>, %arg12: memref<2x64x32xbf16, #tpu.memory_space<vmem>>, %arg13: memref<2x1x32xf32, #tpu.memory_space<vmem>>, %arg14: memref<16x32xf32, #tpu.memory_space<vmem>>) attributes {dimension_semantics = [], scalar_prefetch = 0 : i64, scratch_operands = 0 : i64, tpu.core_type = #tpu.core_type<tc>} {
    %c0 = arith.constant 0 : index
    %c0_0 = arith.constant 0 : index
    %0 = vector.load %arg0[%c0, %c0_0] : memref<16x32xf32, #tpu.memory_space<vmem>>, vector<16x32xf32>
    %c0_1 = arith.constant 0 : index
    %c0_2 = arith.constant 0 : index
    %1 = vector.load %arg2[%c0_1, %c0_2] : memref<16x16xf32, #tpu.memory_space<vmem>>, vector<16x16xf32>
    %2 = arith.truncf %0 : vector<16x32xf32> to vector<16x32xbf16>
    %c0_3 = arith.constant 0 : index
    %c0_4 = arith.constant 0 : index
    %3 = vector.load %arg3[%c0_3, %c0_4] : memref<32x32xbf16, #tpu.memory_space<vmem>>, vector<32x32xbf16>
    %cst = arith.constant dense<0.000000e+00> : vector<16x32xf32>
    %4 = tpu.matmul %2, %3, %cst {dimension_numbers = #tpu.dot_dimension_numbers<[1], [0], [0], [1], [0, 0, 1, 1], [], []>} : vector<16x32xbf16>, vector<32x32xbf16>, vector<16x32xf32> -> vector<16x32xf32>
    %5 = arith.addf %4, %0 : vector<16x32xf32>
    %c0_5 = arith.constant 0 : index
    %c0_6 = arith.constant 0 : index
    %6 = vector.load %arg1[%c0_5, %c0_6] : memref<16x32xf32, #tpu.memory_space<vmem>>, vector<16x32xf32>
    %7 = arith.addf %5, %6 : vector<16x32xf32>
    %cst_7 = arith.constant dense<0.000000e+00> : vector<16xf32>
    %8 = vector.multi_reduction <add>, %7, %cst_7 [1] : vector<16x32xf32> to vector<16xf32>
    %9 = vector.shape_cast %8 : vector<16xf32> to vector<16x1xf32>
    %cst_8 = arith.constant 3.200000e+01 : f32
    %10 = vector.broadcast %cst_8 : f32 to vector<16x1xf32>
    %11 = arith.divf %9, %10 : vector<16x1xf32>
    %12 = arith.mulf %7, %7 : vector<16x32xf32>
    %cst_9 = arith.constant dense<0.000000e+00> : vector<16xf32>
    %13 = vector.multi_reduction <add>, %12, %cst_9 [1] : vector<16x32xf32> to vector<16xf32>
    %14 = vector.shape_cast %13 : vector<16xf32> to vector<16x1xf32>
    %cst_10 = arith.constant 3.200000e+01 : f32
    %15 = vector.broadcast %cst_10 : f32 to vector<16x1xf32>
    %16 = arith.divf %14, %15 : vector<16x1xf32>
    %17 = arith.mulf %11, %11 : vector<16x1xf32>
    %18 = arith.subf %16, %17 : vector<16x1xf32>
    %cst_11 = arith.constant 0.000000e+00 : f32
    %19 = vector.broadcast %cst_11 : f32 to vector<16x1xf32>
    %20 = arith.maximumf %18, %19 : vector<16x1xf32>
    %21 = vector.broadcast %11 : vector<16x1xf32> to vector<16x32xf32>
    %22 = arith.subf %7, %21 : vector<16x32xf32>
    %cst_12 = arith.constant 9.99999996E-13 : f32
    %23 = vector.broadcast %cst_12 : f32 to vector<16x1xf32>
    %24 = arith.addf %20, %23 : vector<16x1xf32>
    %25 = math.rsqrt %24 : vector<16x1xf32>
    %26 = vector.broadcast %25 : vector<16x1xf32> to vector<16x32xf32>
    %27 = arith.mulf %22, %26 : vector<16x32xf32>
    %c0_13 = arith.constant 0 : index
    %c0_14 = arith.constant 0 : index
    %28 = vector.load %arg4[%c0_13, %c0_14] : memref<1x32xf32, #tpu.memory_space<vmem>>, vector<1x32xf32>
    %29 = vector.broadcast %28 : vector<1x32xf32> to vector<16x32xf32>
    %30 = arith.mulf %27, %29 : vector<16x32xf32>
    %c0_15 = arith.constant 0 : index
    %c0_16 = arith.constant 0 : index
    %31 = vector.load %arg5[%c0_15, %c0_16] : memref<1x32xf32, #tpu.memory_space<vmem>>, vector<1x32xf32>
    %32 = vector.broadcast %31 : vector<1x32xf32> to vector<16x32xf32>
    %33 = arith.addf %30, %32 : vector<16x32xf32>
    %cst_17 = arith.constant dense<0.000000e+00> : vector<16xf32>
    %34 = vector.multi_reduction <add>, %33, %cst_17 [1] : vector<16x32xf32> to vector<16xf32>
    %35 = vector.shape_cast %34 : vector<16xf32> to vector<16x1xf32>
    %cst_18 = arith.constant 3.200000e+01 : f32
    %36 = vector.broadcast %cst_18 : f32 to vector<16x1xf32>
    %37 = arith.divf %35, %36 : vector<16x1xf32>
    %38 = arith.mulf %33, %33 : vector<16x32xf32>
    %cst_19 = arith.constant dense<0.000000e+00> : vector<16xf32>
    %39 = vector.multi_reduction <add>, %38, %cst_19 [1] : vector<16x32xf32> to vector<16xf32>
    %40 = vector.shape_cast %39 : vector<16xf32> to vector<16x1xf32>
    %cst_20 = arith.constant 3.200000e+01 : f32
    %41 = vector.broadcast %cst_20 : f32 to vector<16x1xf32>
    %42 = arith.divf %40, %41 : vector<16x1xf32>
    %43 = arith.mulf %37, %37 : vector<16x1xf32>
    %44 = arith.subf %42, %43 : vector<16x1xf32>
    %cst_21 = arith.constant 0.000000e+00 : f32
    %45 = vector.broadcast %cst_21 : f32 to vector<16x1xf32>
    %46 = arith.maximumf %44, %45 : vector<16x1xf32>
    %47 = vector.broadcast %37 : vector<16x1xf32> to vector<16x32xf32>
    %48 = arith.subf %33, %47 : vector<16x32xf32>
    %cst_22 = arith.constant 9.99999974E-6 : f32
    %49 = vector.broadcast %cst_22 : f32 to vector<16x1xf32>
    %50 = arith.addf %46, %49 : vector<16x1xf32>
    %51 = math.rsqrt %50 : vector<16x1xf32>
    %52 = vector.broadcast %51 : vector<16x1xf32> to vector<16x32xf32>
    %53 = arith.mulf %48, %52 : vector<16x32xf32>
    %54 = arith.truncf %53 : vector<16x32xf32> to vector<16x32xbf16>
    %c0_23 = arith.constant 0 : index
    %c0_24 = arith.constant 0 : index
    %c0_25 = arith.constant 0 : index
    %55 = vector.load %arg6[%c0_23, %c0_24, %c0_25] : memref<2x32x96xbf16, #tpu.memory_space<vmem>>, vector<1x32x96xbf16>
    %56 = vector.shape_cast %55 : vector<1x32x96xbf16> to vector<32x96xbf16>
    %cst_26 = arith.constant dense<0.000000e+00> : vector<16x96xf32>
    %57 = tpu.matmul %54, %56, %cst_26 {dimension_numbers = #tpu.dot_dimension_numbers<[1], [0], [0], [1], [0, 0, 1, 1], [], []>} : vector<16x32xbf16>, vector<32x96xbf16>, vector<16x96xf32> -> vector<16x96xf32>
    %c0_27 = arith.constant 0 : index
    %c0_28 = arith.constant 0 : index
    %c0_29 = arith.constant 0 : index
    %58 = vector.load %arg7[%c0_27, %c0_28, %c0_29] : memref<2x1x96xf32, #tpu.memory_space<vmem>>, vector<1x1x96xf32>
    %59 = vector.shape_cast %58 : vector<1x1x96xf32> to vector<1x96xf32>
    %60 = vector.broadcast %59 : vector<1x96xf32> to vector<16x96xf32>
    %61 = arith.addf %57, %60 : vector<16x96xf32>
    %62 = vector.extract_strided_slice %61 {offsets = [0, 0], sizes = [16, 8], strides = [1, 1]} : vector<16x96xf32> to vector<16x8xf32>
    %63 = vector.extract_strided_slice %61 {offsets = [0, 32], sizes = [16, 8], strides = [1, 1]} : vector<16x96xf32> to vector<16x8xf32>
    %64 = vector.extract_strided_slice %61 {offsets = [0, 64], sizes = [16, 8], strides = [1, 1]} : vector<16x96xf32> to vector<16x8xf32>
    %65 = arith.truncf %62 : vector<16x8xf32> to vector<16x8xbf16>
    %66 = arith.truncf %63 : vector<16x8xf32> to vector<16x8xbf16>
    "tpu.trace_start"() <{level = 10 : i32, message = "qd,kd->qk"}> : () -> ()
    %cst_30 = arith.constant dense<0.000000e+00> : vector<16x16xf32>
    %67 = tpu.matmul %65, %66, %cst_30 {dimension_numbers = #tpu.dot_dimension_numbers<[1], [1], [0], [0], [0, 0, 1, 0], [], []>} : vector<16x8xbf16>, vector<16x8xbf16>, vector<16x16xf32> -> vector<16x16xf32>
    "tpu.trace_stop"() : () -> ()
    %cst_31 = arith.constant 0.353553385 : f32
    %68 = vector.broadcast %cst_31 : f32 to vector<16x16xf32>
    %69 = arith.mulf %67, %68 : vector<16x16xf32>
    %70 = arith.addf %69, %1 : vector<16x16xf32>
    %cst_32 = arith.constant dense<0xFF800000> : vector<16xf32>
    %71 = vector.multi_reduction <maximumf>, %70, %cst_32 [1] : vector<16x16xf32> to vector<16xf32>
    %72 = vector.shape_cast %71 : vector<16xf32> to vector<16x1xf32>
    %73 = vector.broadcast %72 : vector<16x1xf32> to vector<16x16xf32>
    %74 = arith.subf %70, %73 : vector<16x16xf32>
    %75 = math.exp %74 : vector<16x16xf32>
    %cst_33 = arith.constant dense<0.000000e+00> : vector<16xf32>
    %76 = vector.multi_reduction <add>, %75, %cst_33 [1] : vector<16x16xf32> to vector<16xf32>
    %77 = vector.shape_cast %76 : vector<16xf32> to vector<16x1xf32>
    %78 = tpu.reciprocal %77 {approx = true} : vector<16x1xf32> -> vector<16x1xf32>
    %79 = vector.broadcast %78 : vector<16x1xf32> to vector<16x16xf32>
    %80 = arith.mulf %75, %79 : vector<16x16xf32>
    %81 = arith.truncf %80 : vector<16x16xf32> to vector<16x16xbf16>
    %82 = arith.truncf %64 : vector<16x8xf32> to vector<16x8xbf16>
    %cst_34 = arith.constant dense<0.000000e+00> : vector<16x8xf32>
    %83 = tpu.matmul %81, %82, %cst_34 {dimension_numbers = #tpu.dot_dimension_numbers<[1], [0], [0], [1], [0, 0, 1, 1], [], []>} : vector<16x16xbf16>, vector<16x8xbf16>, vector<16x8xf32> -> vector<16x8xf32>
    %84 = vector.extract_strided_slice %61 {offsets = [0, 8], sizes = [16, 8], strides = [1, 1]} : vector<16x96xf32> to vector<16x8xf32>
    %85 = vector.extract_strided_slice %61 {offsets = [0, 40], sizes = [16, 8], strides = [1, 1]} : vector<16x96xf32> to vector<16x8xf32>
    %86 = vector.extract_strided_slice %61 {offsets = [0, 72], sizes = [16, 8], strides = [1, 1]} : vector<16x96xf32> to vector<16x8xf32>
    %87 = arith.truncf %84 : vector<16x8xf32> to vector<16x8xbf16>
    %88 = arith.truncf %85 : vector<16x8xf32> to vector<16x8xbf16>
    "tpu.trace_start"() <{level = 10 : i32, message = "qd,kd->qk"}> : () -> ()
    %cst_35 = arith.constant dense<0.000000e+00> : vector<16x16xf32>
    %89 = tpu.matmul %87, %88, %cst_35 {dimension_numbers = #tpu.dot_dimension_numbers<[1], [1], [0], [0], [0, 0, 1, 0], [], []>} : vector<16x8xbf16>, vector<16x8xbf16>, vector<16x16xf32> -> vector<16x16xf32>
    "tpu.trace_stop"() : () -> ()
    %cst_36 = arith.constant 0.353553385 : f32
    %90 = vector.broadcast %cst_36 : f32 to vector<16x16xf32>
    %91 = arith.mulf %89, %90 : vector<16x16xf32>
    %92 = arith.addf %91, %1 : vector<16x16xf32>
    %cst_37 = arith.constant dense<0xFF800000> : vector<16xf32>
    %93 = vector.multi_reduction <maximumf>, %92, %cst_37 [1] : vector<16x16xf32> to vector<16xf32>
    %94 = vector.shape_cast %93 : vector<16xf32> to vector<16x1xf32>
    %95 = vector.broadcast %94 : vector<16x1xf32> to vector<16x16xf32>
    %96 = arith.subf %92, %95 : vector<16x16xf32>
    %97 = math.exp %96 : vector<16x16xf32>
    %cst_38 = arith.constant dense<0.000000e+00> : vector<16xf32>
    %98 = vector.multi_reduction <add>, %97, %cst_38 [1] : vector<16x16xf32> to vector<16xf32>
    %99 = vector.shape_cast %98 : vector<16xf32> to vector<16x1xf32>
    %100 = tpu.reciprocal %99 {approx = true} : vector<16x1xf32> -> vector<16x1xf32>
    %101 = vector.broadcast %100 : vector<16x1xf32> to vector<16x16xf32>
    %102 = arith.mulf %97, %101 : vector<16x16xf32>
    %103 = arith.truncf %102 : vector<16x16xf32> to vector<16x16xbf16>
    %104 = arith.truncf %86 : vector<16x8xf32> to vector<16x8xbf16>
    %cst_39 = arith.constant dense<0.000000e+00> : vector<16x8xf32>
    %105 = tpu.matmul %103, %104, %cst_39 {dimension_numbers = #tpu.dot_dimension_numbers<[1], [0], [0], [1], [0, 0, 1, 1], [], []>} : vector<16x16xbf16>, vector<16x8xbf16>, vector<16x8xf32> -> vector<16x8xf32>
    %106 = vector.extract_strided_slice %61 {offsets = [0, 16], sizes = [16, 8], strides = [1, 1]} : vector<16x96xf32> to vector<16x8xf32>
    %107 = vector.extract_strided_slice %61 {offsets = [0, 48], sizes = [16, 8], strides = [1, 1]} : vector<16x96xf32> to vector<16x8xf32>
    %108 = vector.extract_strided_slice %61 {offsets = [0, 80], sizes = [16, 8], strides = [1, 1]} : vector<16x96xf32> to vector<16x8xf32>
    %109 = arith.truncf %106 : vector<16x8xf32> to vector<16x8xbf16>
    %110 = arith.truncf %107 : vector<16x8xf32> to vector<16x8xbf16>
    "tpu.trace_start"() <{level = 10 : i32, message = "qd,kd->qk"}> : () -> ()
    %cst_40 = arith.constant dense<0.000000e+00> : vector<16x16xf32>
    %111 = tpu.matmul %109, %110, %cst_40 {dimension_numbers = #tpu.dot_dimension_numbers<[1], [1], [0], [0], [0, 0, 1, 0], [], []>} : vector<16x8xbf16>, vector<16x8xbf16>, vector<16x16xf32> -> vector<16x16xf32>
    "tpu.trace_stop"() : () -> ()
    %cst_41 = arith.constant 0.353553385 : f32
    %112 = vector.broadcast %cst_41 : f32 to vector<16x16xf32>
    %113 = arith.mulf %111, %112 : vector<16x16xf32>
    %114 = arith.addf %113, %1 : vector<16x16xf32>
    %cst_42 = arith.constant dense<0xFF800000> : vector<16xf32>
    %115 = vector.multi_reduction <maximumf>, %114, %cst_42 [1] : vector<16x16xf32> to vector<16xf32>
    %116 = vector.shape_cast %115 : vector<16xf32> to vector<16x1xf32>
    %117 = vector.broadcast %116 : vector<16x1xf32> to vector<16x16xf32>
    %118 = arith.subf %114, %117 : vector<16x16xf32>
    %119 = math.exp %118 : vector<16x16xf32>
    %cst_43 = arith.constant dense<0.000000e+00> : vector<16xf32>
    %120 = vector.multi_reduction <add>, %119, %cst_43 [1] : vector<16x16xf32> to vector<16xf32>
    %121 = vector.shape_cast %120 : vector<16xf32> to vector<16x1xf32>
    %122 = tpu.reciprocal %121 {approx = true} : vector<16x1xf32> -> vector<16x1xf32>
    %123 = vector.broadcast %122 : vector<16x1xf32> to vector<16x16xf32>
    %124 = arith.mulf %119, %123 : vector<16x16xf32>
    %125 = arith.truncf %124 : vector<16x16xf32> to vector<16x16xbf16>
    %126 = arith.truncf %108 : vector<16x8xf32> to vector<16x8xbf16>
    %cst_44 = arith.constant dense<0.000000e+00> : vector<16x8xf32>
    %127 = tpu.matmul %125, %126, %cst_44 {dimension_numbers = #tpu.dot_dimension_numbers<[1], [0], [0], [1], [0, 0, 1, 1], [], []>} : vector<16x16xbf16>, vector<16x8xbf16>, vector<16x8xf32> -> vector<16x8xf32>
    %128 = vector.extract_strided_slice %61 {offsets = [0, 24], sizes = [16, 8], strides = [1, 1]} : vector<16x96xf32> to vector<16x8xf32>
    %129 = vector.extract_strided_slice %61 {offsets = [0, 56], sizes = [16, 8], strides = [1, 1]} : vector<16x96xf32> to vector<16x8xf32>
    %130 = vector.extract_strided_slice %61 {offsets = [0, 88], sizes = [16, 8], strides = [1, 1]} : vector<16x96xf32> to vector<16x8xf32>
    %131 = arith.truncf %128 : vector<16x8xf32> to vector<16x8xbf16>
    %132 = arith.truncf %129 : vector<16x8xf32> to vector<16x8xbf16>
    "tpu.trace_start"() <{level = 10 : i32, message = "qd,kd->qk"}> : () -> ()
    %cst_45 = arith.constant dense<0.000000e+00> : vector<16x16xf32>
    %133 = tpu.matmul %131, %132, %cst_45 {dimension_numbers = #tpu.dot_dimension_numbers<[1], [1], [0], [0], [0, 0, 1, 0], [], []>} : vector<16x8xbf16>, vector<16x8xbf16>, vector<16x16xf32> -> vector<16x16xf32>
    "tpu.trace_stop"() : () -> ()
    %cst_46 = arith.constant 0.353553385 : f32
    %134 = vector.broadcast %cst_46 : f32 to vector<16x16xf32>
    %135 = arith.mulf %133, %134 : vector<16x16xf32>
    %136 = arith.addf %135, %1 : vector<16x16xf32>
    %cst_47 = arith.constant dense<0xFF800000> : vector<16xf32>
    %137 = vector.multi_reduction <maximumf>, %136, %cst_47 [1] : vector<16x16xf32> to vector<16xf32>
    %138 = vector.shape_cast %137 : vector<16xf32> to vector<16x1xf32>
    %139 = vector.broadcast %138 : vector<16x1xf32> to vector<16x16xf32>
    %140 = arith.subf %136, %139 : vector<16x16xf32>
    %141 = math.exp %140 : vector<16x16xf32>
    %cst_48 = arith.constant dense<0.000000e+00> : vector<16xf32>
    %142 = vector.multi_reduction <add>, %141, %cst_48 [1] : vector<16x16xf32> to vector<16xf32>
    %143 = vector.shape_cast %142 : vector<16xf32> to vector<16x1xf32>
    %144 = tpu.reciprocal %143 {approx = true} : vector<16x1xf32> -> vector<16x1xf32>
    %145 = vector.broadcast %144 : vector<16x1xf32> to vector<16x16xf32>
    %146 = arith.mulf %141, %145 : vector<16x16xf32>
    %147 = arith.truncf %146 : vector<16x16xf32> to vector<16x16xbf16>
    %148 = arith.truncf %130 : vector<16x8xf32> to vector<16x8xbf16>
    %cst_49 = arith.constant dense<0.000000e+00> : vector<16x8xf32>
    %149 = tpu.matmul %147, %148, %cst_49 {dimension_numbers = #tpu.dot_dimension_numbers<[1], [0], [0], [1], [0, 0, 1, 1], [], []>} : vector<16x16xbf16>, vector<16x8xbf16>, vector<16x8xf32> -> vector<16x8xf32>
    %150 = tpu.concatenate %83, %105, %127, %149 in 1 : vector<16x8xf32>, vector<16x8xf32>, vector<16x8xf32>, vector<16x8xf32> -> vector<16x32xf32>
    %151 = arith.truncf %150 : vector<16x32xf32> to vector<16x32xbf16>
    %c0_50 = arith.constant 0 : index
    %c0_51 = arith.constant 0 : index
    %c0_52 = arith.constant 0 : index
    %152 = vector.load %arg8[%c0_50, %c0_51, %c0_52] : memref<2x32x32xbf16, #tpu.memory_space<vmem>>, vector<1x32x32xbf16>
    %153 = vector.shape_cast %152 : vector<1x32x32xbf16> to vector<32x32xbf16>
    %cst_53 = arith.constant dense<0.000000e+00> : vector<16x32xf32>
    %154 = tpu.matmul %151, %153, %cst_53 {dimension_numbers = #tpu.dot_dimension_numbers<[1], [0], [0], [1], [0, 0, 1, 1], [], []>} : vector<16x32xbf16>, vector<32x32xbf16>, vector<16x32xf32> -> vector<16x32xf32>
    %c0_54 = arith.constant 0 : index
    %c0_55 = arith.constant 0 : index
    %c0_56 = arith.constant 0 : index
    %155 = vector.load %arg9[%c0_54, %c0_55, %c0_56] : memref<2x1x32xf32, #tpu.memory_space<vmem>>, vector<1x1x32xf32>
    %156 = vector.shape_cast %155 : vector<1x1x32xf32> to vector<1x32xf32>
    %157 = vector.broadcast %156 : vector<1x32xf32> to vector<16x32xf32>
    %158 = arith.addf %154, %157 : vector<16x32xf32>
    %159 = arith.addf %33, %158 : vector<16x32xf32>
    %cst_57 = arith.constant dense<0.000000e+00> : vector<16xf32>
    %160 = vector.multi_reduction <add>, %159, %cst_57 [1] : vector<16x32xf32> to vector<16xf32>
    %161 = vector.shape_cast %160 : vector<16xf32> to vector<16x1xf32>
    %cst_58 = arith.constant 3.200000e+01 : f32
    %162 = vector.broadcast %cst_58 : f32 to vector<16x1xf32>
    %163 = arith.divf %161, %162 : vector<16x1xf32>
    %164 = arith.mulf %159, %159 : vector<16x32xf32>
    %cst_59 = arith.constant dense<0.000000e+00> : vector<16xf32>
    %165 = vector.multi_reduction <add>, %164, %cst_59 [1] : vector<16x32xf32> to vector<16xf32>
    %166 = vector.shape_cast %165 : vector<16xf32> to vector<16x1xf32>
    %cst_60 = arith.constant 3.200000e+01 : f32
    %167 = vector.broadcast %cst_60 : f32 to vector<16x1xf32>
    %168 = arith.divf %166, %167 : vector<16x1xf32>
    %169 = arith.mulf %163, %163 : vector<16x1xf32>
    %170 = arith.subf %168, %169 : vector<16x1xf32>
    %cst_61 = arith.constant 0.000000e+00 : f32
    %171 = vector.broadcast %cst_61 : f32 to vector<16x1xf32>
    %172 = arith.maximumf %170, %171 : vector<16x1xf32>
    %173 = vector.broadcast %163 : vector<16x1xf32> to vector<16x32xf32>
    %174 = arith.subf %159, %173 : vector<16x32xf32>
    %cst_62 = arith.constant 9.99999974E-6 : f32
    %175 = vector.broadcast %cst_62 : f32 to vector<16x1xf32>
    %176 = arith.addf %172, %175 : vector<16x1xf32>
    %177 = math.rsqrt %176 : vector<16x1xf32>
    %178 = vector.broadcast %177 : vector<16x1xf32> to vector<16x32xf32>
    %179 = arith.mulf %174, %178 : vector<16x32xf32>
    %180 = arith.truncf %179 : vector<16x32xf32> to vector<16x32xbf16>
    %c0_63 = arith.constant 0 : index
    %c0_64 = arith.constant 0 : index
    %c0_65 = arith.constant 0 : index
    %181 = vector.load %arg10[%c0_63, %c0_64, %c0_65] : memref<2x32x64xbf16, #tpu.memory_space<vmem>>, vector<1x32x64xbf16>
    %182 = vector.shape_cast %181 : vector<1x32x64xbf16> to vector<32x64xbf16>
    %cst_66 = arith.constant dense<0.000000e+00> : vector<16x64xf32>
    %183 = tpu.matmul %180, %182, %cst_66 {dimension_numbers = #tpu.dot_dimension_numbers<[1], [0], [0], [1], [0, 0, 1, 1], [], []>} : vector<16x32xbf16>, vector<32x64xbf16>, vector<16x64xf32> -> vector<16x64xf32>
    %c0_67 = arith.constant 0 : index
    %c0_68 = arith.constant 0 : index
    %c0_69 = arith.constant 0 : index
    %184 = vector.load %arg11[%c0_67, %c0_68, %c0_69] : memref<2x1x64xf32, #tpu.memory_space<vmem>>, vector<1x1x64xf32>
    %185 = vector.shape_cast %184 : vector<1x1x64xf32> to vector<1x64xf32>
    %186 = vector.broadcast %185 : vector<1x64xf32> to vector<16x64xf32>
    %187 = arith.addf %183, %186 : vector<16x64xf32>
    %cst_70 = arith.constant 5.000000e-01 : f32
    %188 = vector.broadcast %cst_70 : f32 to vector<16x64xf32>
    %189 = arith.mulf %188, %187 : vector<16x64xf32>
    %cst_71 = arith.constant 4.471500e-02 : f32
    %190 = vector.broadcast %cst_71 : f32 to vector<16x64xf32>
    %191 = arith.mulf %190, %187 : vector<16x64xf32>
    %192 = arith.mulf %191, %187 : vector<16x64xf32>
    %193 = arith.mulf %192, %187 : vector<16x64xf32>
    %194 = arith.addf %187, %193 : vector<16x64xf32>
    %cst_72 = arith.constant 0.797884583 : f32
    %195 = vector.broadcast %cst_72 : f32 to vector<16x64xf32>
    %196 = arith.mulf %195, %194 : vector<16x64xf32>
    %197 = math.tanh %196 : vector<16x64xf32>
    %cst_73 = arith.constant 1.000000e+00 : f32
    %198 = vector.broadcast %cst_73 : f32 to vector<16x64xf32>
    %199 = arith.addf %198, %197 : vector<16x64xf32>
    %200 = arith.mulf %189, %199 : vector<16x64xf32>
    %201 = arith.truncf %200 : vector<16x64xf32> to vector<16x64xbf16>
    %c0_74 = arith.constant 0 : index
    %c0_75 = arith.constant 0 : index
    %c0_76 = arith.constant 0 : index
    %202 = vector.load %arg12[%c0_74, %c0_75, %c0_76] : memref<2x64x32xbf16, #tpu.memory_space<vmem>>, vector<1x64x32xbf16>
    %203 = vector.shape_cast %202 : vector<1x64x32xbf16> to vector<64x32xbf16>
    %cst_77 = arith.constant dense<0.000000e+00> : vector<16x32xf32>
    %204 = tpu.matmul %201, %203, %cst_77 {dimension_numbers = #tpu.dot_dimension_numbers<[1], [0], [0], [1], [0, 0, 1, 1], [], []>} : vector<16x64xbf16>, vector<64x32xbf16>, vector<16x32xf32> -> vector<16x32xf32>
    %c0_78 = arith.constant 0 : index
    %c0_79 = arith.constant 0 : index
    %c0_80 = arith.constant 0 : index
    %205 = vector.load %arg13[%c0_78, %c0_79, %c0_80] : memref<2x1x32xf32, #tpu.memory_space<vmem>>, vector<1x1x32xf32>
    %206 = vector.shape_cast %205 : vector<1x1x32xf32> to vector<1x32xf32>
    %207 = vector.broadcast %206 : vector<1x32xf32> to vector<16x32xf32>
    %208 = arith.addf %204, %207 : vector<16x32xf32>
    %209 = arith.addf %159, %208 : vector<16x32xf32>
    %cst_81 = arith.constant dense<0.000000e+00> : vector<16xf32>
    %210 = vector.multi_reduction <add>, %209, %cst_81 [1] : vector<16x32xf32> to vector<16xf32>
    %211 = vector.shape_cast %210 : vector<16xf32> to vector<16x1xf32>
    %cst_82 = arith.constant 3.200000e+01 : f32
    %212 = vector.broadcast %cst_82 : f32 to vector<16x1xf32>
    %213 = arith.divf %211, %212 : vector<16x1xf32>
    %214 = arith.mulf %209, %209 : vector<16x32xf32>
    %cst_83 = arith.constant dense<0.000000e+00> : vector<16xf32>
    %215 = vector.multi_reduction <add>, %214, %cst_83 [1] : vector<16x32xf32> to vector<16xf32>
    %216 = vector.shape_cast %215 : vector<16xf32> to vector<16x1xf32>
    %cst_84 = arith.constant 3.200000e+01 : f32
    %217 = vector.broadcast %cst_84 : f32 to vector<16x1xf32>
    %218 = arith.divf %216, %217 : vector<16x1xf32>
    %219 = arith.mulf %213, %213 : vector<16x1xf32>
    %220 = arith.subf %218, %219 : vector<16x1xf32>
    %cst_85 = arith.constant 0.000000e+00 : f32
    %221 = vector.broadcast %cst_85 : f32 to vector<16x1xf32>
    %222 = arith.maximumf %220, %221 : vector<16x1xf32>
    %223 = vector.broadcast %213 : vector<16x1xf32> to vector<16x32xf32>
    %224 = arith.subf %209, %223 : vector<16x32xf32>
    %cst_86 = arith.constant 9.99999974E-6 : f32
    %225 = vector.broadcast %cst_86 : f32 to vector<16x1xf32>
    %226 = arith.addf %222, %225 : vector<16x1xf32>
    %227 = math.rsqrt %226 : vector<16x1xf32>
    %228 = vector.broadcast %227 : vector<16x1xf32> to vector<16x32xf32>
    %229 = arith.mulf %224, %228 : vector<16x32xf32>
    %230 = arith.truncf %229 : vector<16x32xf32> to vector<16x32xbf16>
    %c1 = arith.constant 1 : index
    %c0_87 = arith.constant 0 : index
    %c0_88 = arith.constant 0 : index
    %231 = vector.load %arg6[%c1, %c0_87, %c0_88] : memref<2x32x96xbf16, #tpu.memory_space<vmem>>, vector<1x32x96xbf16>
    %232 = vector.shape_cast %231 : vector<1x32x96xbf16> to vector<32x96xbf16>
    %cst_89 = arith.constant dense<0.000000e+00> : vector<16x96xf32>
    %233 = tpu.matmul %230, %232, %cst_89 {dimension_numbers = #tpu.dot_dimension_numbers<[1], [0], [0], [1], [0, 0, 1, 1], [], []>} : vector<16x32xbf16>, vector<32x96xbf16>, vector<16x96xf32> -> vector<16x96xf32>
    %c1_90 = arith.constant 1 : index
    %c0_91 = arith.constant 0 : index
    %c0_92 = arith.constant 0 : index
    %234 = vector.load %arg7[%c1_90, %c0_91, %c0_92] : memref<2x1x96xf32, #tpu.memory_space<vmem>>, vector<1x1x96xf32>
    %235 = vector.shape_cast %234 : vector<1x1x96xf32> to vector<1x96xf32>
    %236 = vector.broadcast %235 : vector<1x96xf32> to vector<16x96xf32>
    %237 = arith.addf %233, %236 : vector<16x96xf32>
    %238 = vector.extract_strided_slice %237 {offsets = [0, 0], sizes = [16, 8], strides = [1, 1]} : vector<16x96xf32> to vector<16x8xf32>
    %239 = vector.extract_strided_slice %237 {offsets = [0, 32], sizes = [16, 8], strides = [1, 1]} : vector<16x96xf32> to vector<16x8xf32>
    %240 = vector.extract_strided_slice %237 {offsets = [0, 64], sizes = [16, 8], strides = [1, 1]} : vector<16x96xf32> to vector<16x8xf32>
    %241 = arith.truncf %238 : vector<16x8xf32> to vector<16x8xbf16>
    %242 = arith.truncf %239 : vector<16x8xf32> to vector<16x8xbf16>
    "tpu.trace_start"() <{level = 10 : i32, message = "qd,kd->qk"}> : () -> ()
    %cst_93 = arith.constant dense<0.000000e+00> : vector<16x16xf32>
    %243 = tpu.matmul %241, %242, %cst_93 {dimension_numbers = #tpu.dot_dimension_numbers<[1], [1], [0], [0], [0, 0, 1, 0], [], []>} : vector<16x8xbf16>, vector<16x8xbf16>, vector<16x16xf32> -> vector<16x16xf32>
    "tpu.trace_stop"() : () -> ()
    %cst_94 = arith.constant 0.353553385 : f32
    %244 = vector.broadcast %cst_94 : f32 to vector<16x16xf32>
    %245 = arith.mulf %243, %244 : vector<16x16xf32>
    %246 = arith.addf %245, %1 : vector<16x16xf32>
    %cst_95 = arith.constant dense<0xFF800000> : vector<16xf32>
    %247 = vector.multi_reduction <maximumf>, %246, %cst_95 [1] : vector<16x16xf32> to vector<16xf32>
    %248 = vector.shape_cast %247 : vector<16xf32> to vector<16x1xf32>
    %249 = vector.broadcast %248 : vector<16x1xf32> to vector<16x16xf32>
    %250 = arith.subf %246, %249 : vector<16x16xf32>
    %251 = math.exp %250 : vector<16x16xf32>
    %cst_96 = arith.constant dense<0.000000e+00> : vector<16xf32>
    %252 = vector.multi_reduction <add>, %251, %cst_96 [1] : vector<16x16xf32> to vector<16xf32>
    %253 = vector.shape_cast %252 : vector<16xf32> to vector<16x1xf32>
    %254 = tpu.reciprocal %253 {approx = true} : vector<16x1xf32> -> vector<16x1xf32>
    %255 = vector.broadcast %254 : vector<16x1xf32> to vector<16x16xf32>
    %256 = arith.mulf %251, %255 : vector<16x16xf32>
    %257 = arith.truncf %256 : vector<16x16xf32> to vector<16x16xbf16>
    %258 = arith.truncf %240 : vector<16x8xf32> to vector<16x8xbf16>
    %cst_97 = arith.constant dense<0.000000e+00> : vector<16x8xf32>
    %259 = tpu.matmul %257, %258, %cst_97 {dimension_numbers = #tpu.dot_dimension_numbers<[1], [0], [0], [1], [0, 0, 1, 1], [], []>} : vector<16x16xbf16>, vector<16x8xbf16>, vector<16x8xf32> -> vector<16x8xf32>
    %260 = vector.extract_strided_slice %237 {offsets = [0, 8], sizes = [16, 8], strides = [1, 1]} : vector<16x96xf32> to vector<16x8xf32>
    %261 = vector.extract_strided_slice %237 {offsets = [0, 40], sizes = [16, 8], strides = [1, 1]} : vector<16x96xf32> to vector<16x8xf32>
    %262 = vector.extract_strided_slice %237 {offsets = [0, 72], sizes = [16, 8], strides = [1, 1]} : vector<16x96xf32> to vector<16x8xf32>
    %263 = arith.truncf %260 : vector<16x8xf32> to vector<16x8xbf16>
    %264 = arith.truncf %261 : vector<16x8xf32> to vector<16x8xbf16>
    "tpu.trace_start"() <{level = 10 : i32, message = "qd,kd->qk"}> : () -> ()
    %cst_98 = arith.constant dense<0.000000e+00> : vector<16x16xf32>
    %265 = tpu.matmul %263, %264, %cst_98 {dimension_numbers = #tpu.dot_dimension_numbers<[1], [1], [0], [0], [0, 0, 1, 0], [], []>} : vector<16x8xbf16>, vector<16x8xbf16>, vector<16x16xf32> -> vector<16x16xf32>
    "tpu.trace_stop"() : () -> ()
    %cst_99 = arith.constant 0.353553385 : f32
    %266 = vector.broadcast %cst_99 : f32 to vector<16x16xf32>
    %267 = arith.mulf %265, %266 : vector<16x16xf32>
    %268 = arith.addf %267, %1 : vector<16x16xf32>
    %cst_100 = arith.constant dense<0xFF800000> : vector<16xf32>
    %269 = vector.multi_reduction <maximumf>, %268, %cst_100 [1] : vector<16x16xf32> to vector<16xf32>
    %270 = vector.shape_cast %269 : vector<16xf32> to vector<16x1xf32>
    %271 = vector.broadcast %270 : vector<16x1xf32> to vector<16x16xf32>
    %272 = arith.subf %268, %271 : vector<16x16xf32>
    %273 = math.exp %272 : vector<16x16xf32>
    %cst_101 = arith.constant dense<0.000000e+00> : vector<16xf32>
    %274 = vector.multi_reduction <add>, %273, %cst_101 [1] : vector<16x16xf32> to vector<16xf32>
    %275 = vector.shape_cast %274 : vector<16xf32> to vector<16x1xf32>
    %276 = tpu.reciprocal %275 {approx = true} : vector<16x1xf32> -> vector<16x1xf32>
    %277 = vector.broadcast %276 : vector<16x1xf32> to vector<16x16xf32>
    %278 = arith.mulf %273, %277 : vector<16x16xf32>
    %279 = arith.truncf %278 : vector<16x16xf32> to vector<16x16xbf16>
    %280 = arith.truncf %262 : vector<16x8xf32> to vector<16x8xbf16>
    %cst_102 = arith.constant dense<0.000000e+00> : vector<16x8xf32>
    %281 = tpu.matmul %279, %280, %cst_102 {dimension_numbers = #tpu.dot_dimension_numbers<[1], [0], [0], [1], [0, 0, 1, 1], [], []>} : vector<16x16xbf16>, vector<16x8xbf16>, vector<16x8xf32> -> vector<16x8xf32>
    %282 = vector.extract_strided_slice %237 {offsets = [0, 16], sizes = [16, 8], strides = [1, 1]} : vector<16x96xf32> to vector<16x8xf32>
    %283 = vector.extract_strided_slice %237 {offsets = [0, 48], sizes = [16, 8], strides = [1, 1]} : vector<16x96xf32> to vector<16x8xf32>
    %284 = vector.extract_strided_slice %237 {offsets = [0, 80], sizes = [16, 8], strides = [1, 1]} : vector<16x96xf32> to vector<16x8xf32>
    %285 = arith.truncf %282 : vector<16x8xf32> to vector<16x8xbf16>
    %286 = arith.truncf %283 : vector<16x8xf32> to vector<16x8xbf16>
    "tpu.trace_start"() <{level = 10 : i32, message = "qd,kd->qk"}> : () -> ()
    %cst_103 = arith.constant dense<0.000000e+00> : vector<16x16xf32>
    %287 = tpu.matmul %285, %286, %cst_103 {dimension_numbers = #tpu.dot_dimension_numbers<[1], [1], [0], [0], [0, 0, 1, 0], [], []>} : vector<16x8xbf16>, vector<16x8xbf16>, vector<16x16xf32> -> vector<16x16xf32>
    "tpu.trace_stop"() : () -> ()
    %cst_104 = arith.constant 0.353553385 : f32
    %288 = vector.broadcast %cst_104 : f32 to vector<16x16xf32>
    %289 = arith.mulf %287, %288 : vector<16x16xf32>
    %290 = arith.addf %289, %1 : vector<16x16xf32>
    %cst_105 = arith.constant dense<0xFF800000> : vector<16xf32>
    %291 = vector.multi_reduction <maximumf>, %290, %cst_105 [1] : vector<16x16xf32> to vector<16xf32>
    %292 = vector.shape_cast %291 : vector<16xf32> to vector<16x1xf32>
    %293 = vector.broadcast %292 : vector<16x1xf32> to vector<16x16xf32>
    %294 = arith.subf %290, %293 : vector<16x16xf32>
    %295 = math.exp %294 : vector<16x16xf32>
    %cst_106 = arith.constant dense<0.000000e+00> : vector<16xf32>
    %296 = vector.multi_reduction <add>, %295, %cst_106 [1] : vector<16x16xf32> to vector<16xf32>
    %297 = vector.shape_cast %296 : vector<16xf32> to vector<16x1xf32>
    %298 = tpu.reciprocal %297 {approx = true} : vector<16x1xf32> -> vector<16x1xf32>
    %299 = vector.broadcast %298 : vector<16x1xf32> to vector<16x16xf32>
    %300 = arith.mulf %295, %299 : vector<16x16xf32>
    %301 = arith.truncf %300 : vector<16x16xf32> to vector<16x16xbf16>
    %302 = arith.truncf %284 : vector<16x8xf32> to vector<16x8xbf16>
    %cst_107 = arith.constant dense<0.000000e+00> : vector<16x8xf32>
    %303 = tpu.matmul %301, %302, %cst_107 {dimension_numbers = #tpu.dot_dimension_numbers<[1], [0], [0], [1], [0, 0, 1, 1], [], []>} : vector<16x16xbf16>, vector<16x8xbf16>, vector<16x8xf32> -> vector<16x8xf32>
    %304 = vector.extract_strided_slice %237 {offsets = [0, 24], sizes = [16, 8], strides = [1, 1]} : vector<16x96xf32> to vector<16x8xf32>
    %305 = vector.extract_strided_slice %237 {offsets = [0, 56], sizes = [16, 8], strides = [1, 1]} : vector<16x96xf32> to vector<16x8xf32>
    %306 = vector.extract_strided_slice %237 {offsets = [0, 88], sizes = [16, 8], strides = [1, 1]} : vector<16x96xf32> to vector<16x8xf32>
    %307 = arith.truncf %304 : vector<16x8xf32> to vector<16x8xbf16>
    %308 = arith.truncf %305 : vector<16x8xf32> to vector<16x8xbf16>
    "tpu.trace_start"() <{level = 10 : i32, message = "qd,kd->qk"}> : () -> ()
    %cst_108 = arith.constant dense<0.000000e+00> : vector<16x16xf32>
    %309 = tpu.matmul %307, %308, %cst_108 {dimension_numbers = #tpu.dot_dimension_numbers<[1], [1], [0], [0], [0, 0, 1, 0], [], []>} : vector<16x8xbf16>, vector<16x8xbf16>, vector<16x16xf32> -> vector<16x16xf32>
    "tpu.trace_stop"() : () -> ()
    %cst_109 = arith.constant 0.353553385 : f32
    %310 = vector.broadcast %cst_109 : f32 to vector<16x16xf32>
    %311 = arith.mulf %309, %310 : vector<16x16xf32>
    %312 = arith.addf %311, %1 : vector<16x16xf32>
    %cst_110 = arith.constant dense<0xFF800000> : vector<16xf32>
    %313 = vector.multi_reduction <maximumf>, %312, %cst_110 [1] : vector<16x16xf32> to vector<16xf32>
    %314 = vector.shape_cast %313 : vector<16xf32> to vector<16x1xf32>
    %315 = vector.broadcast %314 : vector<16x1xf32> to vector<16x16xf32>
    %316 = arith.subf %312, %315 : vector<16x16xf32>
    %317 = math.exp %316 : vector<16x16xf32>
    %cst_111 = arith.constant dense<0.000000e+00> : vector<16xf32>
    %318 = vector.multi_reduction <add>, %317, %cst_111 [1] : vector<16x16xf32> to vector<16xf32>
    %319 = vector.shape_cast %318 : vector<16xf32> to vector<16x1xf32>
    %320 = tpu.reciprocal %319 {approx = true} : vector<16x1xf32> -> vector<16x1xf32>
    %321 = vector.broadcast %320 : vector<16x1xf32> to vector<16x16xf32>
    %322 = arith.mulf %317, %321 : vector<16x16xf32>
    %323 = arith.truncf %322 : vector<16x16xf32> to vector<16x16xbf16>
    %324 = arith.truncf %306 : vector<16x8xf32> to vector<16x8xbf16>
    %cst_112 = arith.constant dense<0.000000e+00> : vector<16x8xf32>
    %325 = tpu.matmul %323, %324, %cst_112 {dimension_numbers = #tpu.dot_dimension_numbers<[1], [0], [0], [1], [0, 0, 1, 1], [], []>} : vector<16x16xbf16>, vector<16x8xbf16>, vector<16x8xf32> -> vector<16x8xf32>
    %326 = tpu.concatenate %259, %281, %303, %325 in 1 : vector<16x8xf32>, vector<16x8xf32>, vector<16x8xf32>, vector<16x8xf32> -> vector<16x32xf32>
    %327 = arith.truncf %326 : vector<16x32xf32> to vector<16x32xbf16>
    %c1_113 = arith.constant 1 : index
    %c0_114 = arith.constant 0 : index
    %c0_115 = arith.constant 0 : index
    %328 = vector.load %arg8[%c1_113, %c0_114, %c0_115] : memref<2x32x32xbf16, #tpu.memory_space<vmem>>, vector<1x32x32xbf16>
    %329 = vector.shape_cast %328 : vector<1x32x32xbf16> to vector<32x32xbf16>
    %cst_116 = arith.constant dense<0.000000e+00> : vector<16x32xf32>
    %330 = tpu.matmul %327, %329, %cst_116 {dimension_numbers = #tpu.dot_dimension_numbers<[1], [0], [0], [1], [0, 0, 1, 1], [], []>} : vector<16x32xbf16>, vector<32x32xbf16>, vector<16x32xf32> -> vector<16x32xf32>
    %c1_117 = arith.constant 1 : index
    %c0_118 = arith.constant 0 : index
    %c0_119 = arith.constant 0 : index
    %331 = vector.load %arg9[%c1_117, %c0_118, %c0_119] : memref<2x1x32xf32, #tpu.memory_space<vmem>>, vector<1x1x32xf32>
    %332 = vector.shape_cast %331 : vector<1x1x32xf32> to vector<1x32xf32>
    %333 = vector.broadcast %332 : vector<1x32xf32> to vector<16x32xf32>
    %334 = arith.addf %330, %333 : vector<16x32xf32>
    %335 = arith.addf %209, %334 : vector<16x32xf32>
    %cst_120 = arith.constant dense<0.000000e+00> : vector<16xf32>
    %336 = vector.multi_reduction <add>, %335, %cst_120 [1] : vector<16x32xf32> to vector<16xf32>
    %337 = vector.shape_cast %336 : vector<16xf32> to vector<16x1xf32>
    %cst_121 = arith.constant 3.200000e+01 : f32
    %338 = vector.broadcast %cst_121 : f32 to vector<16x1xf32>
    %339 = arith.divf %337, %338 : vector<16x1xf32>
    %340 = arith.mulf %335, %335 : vector<16x32xf32>
    %cst_122 = arith.constant dense<0.000000e+00> : vector<16xf32>
    %341 = vector.multi_reduction <add>, %340, %cst_122 [1] : vector<16x32xf32> to vector<16xf32>
    %342 = vector.shape_cast %341 : vector<16xf32> to vector<16x1xf32>
    %cst_123 = arith.constant 3.200000e+01 : f32
    %343 = vector.broadcast %cst_123 : f32 to vector<16x1xf32>
    %344 = arith.divf %342, %343 : vector<16x1xf32>
    %345 = arith.mulf %339, %339 : vector<16x1xf32>
    %346 = arith.subf %344, %345 : vector<16x1xf32>
    %cst_124 = arith.constant 0.000000e+00 : f32
    %347 = vector.broadcast %cst_124 : f32 to vector<16x1xf32>
    %348 = arith.maximumf %346, %347 : vector<16x1xf32>
    %349 = vector.broadcast %339 : vector<16x1xf32> to vector<16x32xf32>
    %350 = arith.subf %335, %349 : vector<16x32xf32>
    %cst_125 = arith.constant 9.99999974E-6 : f32
    %351 = vector.broadcast %cst_125 : f32 to vector<16x1xf32>
    %352 = arith.addf %348, %351 : vector<16x1xf32>
    %353 = math.rsqrt %352 : vector<16x1xf32>
    %354 = vector.broadcast %353 : vector<16x1xf32> to vector<16x32xf32>
    %355 = arith.mulf %350, %354 : vector<16x32xf32>
    %356 = arith.truncf %355 : vector<16x32xf32> to vector<16x32xbf16>
    %c1_126 = arith.constant 1 : index
    %c0_127 = arith.constant 0 : index
    %c0_128 = arith.constant 0 : index
    %357 = vector.load %arg10[%c1_126, %c0_127, %c0_128] : memref<2x32x64xbf16, #tpu.memory_space<vmem>>, vector<1x32x64xbf16>
    %358 = vector.shape_cast %357 : vector<1x32x64xbf16> to vector<32x64xbf16>
    %cst_129 = arith.constant dense<0.000000e+00> : vector<16x64xf32>
    %359 = tpu.matmul %356, %358, %cst_129 {dimension_numbers = #tpu.dot_dimension_numbers<[1], [0], [0], [1], [0, 0, 1, 1], [], []>} : vector<16x32xbf16>, vector<32x64xbf16>, vector<16x64xf32> -> vector<16x64xf32>
    %c1_130 = arith.constant 1 : index
    %c0_131 = arith.constant 0 : index
    %c0_132 = arith.constant 0 : index
    %360 = vector.load %arg11[%c1_130, %c0_131, %c0_132] : memref<2x1x64xf32, #tpu.memory_space<vmem>>, vector<1x1x64xf32>
    %361 = vector.shape_cast %360 : vector<1x1x64xf32> to vector<1x64xf32>
    %362 = vector.broadcast %361 : vector<1x64xf32> to vector<16x64xf32>
    %363 = arith.addf %359, %362 : vector<16x64xf32>
    %cst_133 = arith.constant 5.000000e-01 : f32
    %364 = vector.broadcast %cst_133 : f32 to vector<16x64xf32>
    %365 = arith.mulf %364, %363 : vector<16x64xf32>
    %cst_134 = arith.constant 4.471500e-02 : f32
    %366 = vector.broadcast %cst_134 : f32 to vector<16x64xf32>
    %367 = arith.mulf %366, %363 : vector<16x64xf32>
    %368 = arith.mulf %367, %363 : vector<16x64xf32>
    %369 = arith.mulf %368, %363 : vector<16x64xf32>
    %370 = arith.addf %363, %369 : vector<16x64xf32>
    %cst_135 = arith.constant 0.797884583 : f32
    %371 = vector.broadcast %cst_135 : f32 to vector<16x64xf32>
    %372 = arith.mulf %371, %370 : vector<16x64xf32>
    %373 = math.tanh %372 : vector<16x64xf32>
    %cst_136 = arith.constant 1.000000e+00 : f32
    %374 = vector.broadcast %cst_136 : f32 to vector<16x64xf32>
    %375 = arith.addf %374, %373 : vector<16x64xf32>
    %376 = arith.mulf %365, %375 : vector<16x64xf32>
    %377 = arith.truncf %376 : vector<16x64xf32> to vector<16x64xbf16>
    %c1_137 = arith.constant 1 : index
    %c0_138 = arith.constant 0 : index
    %c0_139 = arith.constant 0 : index
    %378 = vector.load %arg12[%c1_137, %c0_138, %c0_139] : memref<2x64x32xbf16, #tpu.memory_space<vmem>>, vector<1x64x32xbf16>
    %379 = vector.shape_cast %378 : vector<1x64x32xbf16> to vector<64x32xbf16>
    %cst_140 = arith.constant dense<0.000000e+00> : vector<16x32xf32>
    %380 = tpu.matmul %377, %379, %cst_140 {dimension_numbers = #tpu.dot_dimension_numbers<[1], [0], [0], [1], [0, 0, 1, 1], [], []>} : vector<16x64xbf16>, vector<64x32xbf16>, vector<16x32xf32> -> vector<16x32xf32>
    %c1_141 = arith.constant 1 : index
    %c0_142 = arith.constant 0 : index
    %c0_143 = arith.constant 0 : index
    %381 = vector.load %arg13[%c1_141, %c0_142, %c0_143] : memref<2x1x32xf32, #tpu.memory_space<vmem>>, vector<1x1x32xf32>
    %382 = vector.shape_cast %381 : vector<1x1x32xf32> to vector<1x32xf32>
    %383 = vector.broadcast %382 : vector<1x32xf32> to vector<16x32xf32>
    %384 = arith.addf %380, %383 : vector<16x32xf32>
    %385 = arith.addf %335, %384 : vector<16x32xf32>
    %c0_144 = arith.constant 0 : index
    %c0_145 = arith.constant 0 : index
    %386 = vector.load %arg14[%c0_144, %c0_145] : memref<16x32xf32, #tpu.memory_space<vmem>>, vector<16x32xf32>
    tpu.vector_store %arg14[%c0_144, %c0_145], %385 {strides = array<i32>} : memref<16x32xf32, #tpu.memory_space<vmem>>, vector<16x32xf32>,
    return
  }
}

</mosaic_0001>

<llo_original>
// kernel: tpu_custom_call.1
$region0: #{tpu_custom_call.1}
  #allocation0 [shape = 'u32[]', space=smem, size = 0x4, offset = 0x4, fixed_abs, tag = 'smem constant byte address 0x4 - core index']
  #allocation1 [shape = 'u32[144,128]{1,0:T(1,128)}', space=vmem, size = 0x12000, scoped, tag = 'internal scratch']
  %s0 = inlined_call_operand.hbm [shape: f32[16,32], index: 0, kind: input, shape index: {}]
  %s1 = inlined_call_operand.hbm [shape: f32[16,32], index: 1, kind: input, shape index: {}]
  %s2 = inlined_call_operand.hbm [shape: f32[16,16], index: 2, kind: input, shape index: {}]
  %s3 = inlined_call_operand.hbm [shape: bf16[32,32], index: 3, kind: input, shape index: {}]
  %s4 = inlined_call_operand.vmem [shape: f32[1,32], index: 4, kind: input, shape index: {}]
  %s5 = inlined_call_operand.hbm [shape: f32[1,32], index: 5, kind: input, shape index: {}]
  %s6 = inlined_call_operand.vmem [shape: bf16[2,32,96], index: 6, kind: input, shape index: {}]
  %s7 = inlined_call_operand.vmem [shape: f32[2,1,96], index: 7, kind: input, shape index: {}]
  %s8 = inlined_call_operand.vmem [shape: bf16[2,32,32], index: 8, kind: input, shape index: {}]
  %s9 = inlined_call_operand.vmem [shape: f32[2,1,32], index: 9, kind: input, shape index: {}]
  %s10 = inlined_call_operand.vmem [shape: bf16[2,32,64], index: 10, kind: input, shape index: {}]
  %s11 = inlined_call_operand.vmem [shape: f32[2,1,64], index: 11, kind: input, shape index: {}]
  %s12 = inlined_call_operand.vmem [shape: bf16[2,64,32], index: 12, kind: input, shape index: {}]
  %s13 = inlined_call_operand.vmem [shape: f32[2,1,32], index: 13, kind: input, shape index: {}]
  %s14 = inlined_call_operand.hbm [shape: f32[16,32], index: 14, kind: output, shape index: {}]
  %s15 = sld [smem:[#allocation0]]
  $region86: #{tpu_custom_call.1} parent=0
    _
  %s17 = ssub.s32 1, %s15
  %s18 = scalar_select 0, %s17, %s15
  $region1: #{tpu_custom_call.1} parent=0
    #allocation2 [shape = 'u8[8192]{0}', space=vmem, size = 0x2000, scoped, tag = 'input window, operand 0, single buffered']
    #allocation3 [shape = 's32[1]{0}', space=sflag, size = 0x4, scoped, tag = 'scoped memory for tpu_custom_call.1']
    #allocation4 [shape = 's32[1]{0}', space=sflag, size = 0x4, scoped, tag = 'scoped memory for tpu_custom_call.1']
    #allocation5 [shape = 'u8[8192]{0}', space=vmem, size = 0x2000, scoped, tag = 'input window, operand 1, single buffered']
    #allocation6 [shape = 's32[1]{0}', space=sflag, size = 0x4, scoped, tag = 'scoped memory for tpu_custom_call.1']
    #allocation7 [shape = 'u8[8192]{0}', space=vmem, size = 0x2000, scoped, tag = 'input window, operand 2, single buffered']
    #allocation8 [shape = 'u8[8192]{0}', space=vmem, size = 0x2000, scoped, tag = 'input window, operand 3, single buffered']
    #allocation9 [shape = 's32[1]{0}', space=sflag, size = 0x4, scoped, tag = 'scoped memory for tpu_custom_call.1']
    #allocation10 [shape = 'u8[512]{0}', space=vmem, size = 0x400, scoped, tag = 'input window, operand 5, single buffered']
    #allocation11 [shape = 'u8[8192]{0}', space=vmem, size = 0x2000, scoped, tag = 'output window, operand 0, single buffered']
    %19 = vsyncpa [#allocation3], 0
    %20 = vsyncpa [#allocation6], 0
    %21 = vsyncpa [#allocation9], 0
    %22 = vsyncpa [#allocation4], 0
    // Predicated region
    $region2: #{tpu_custom_call.1} parent=1 // pred_check
      _
    $region3: #{tpu_custom_call.1} parent=1 // pred_check_branch
      %24 = sbr.rel (0) target = $region5
    $region4: #{tpu_custom_call.1} parent=1 // pred_region
      %s26 = ssub.s32 256, 256
      %27 = vsyncadd [#allocation3], %s26
      %s28 = sshll.u32 [#allocation2], 4
      %s29 = int_to_ptr.vmem [resolvable:$true] %s28
      %34 = dma.hbm_to_vmem [thread:$0]  %s0, 256, %s29, [#allocation3], 128, 128, 8
    $region5: #{tpu_custom_call.1} parent=1 // pred_fallthru
      _
    // Predicated region
    $region6: #{tpu_custom_call.1} parent=1 // pred_check
      _
    $region7: #{tpu_custom_call.1} parent=1 // pred_check_branch
      %36 = sbr.rel (0) target = $region9
    $region8: #{tpu_custom_call.1} parent=1 // pred_region
      %s38 = ssub.s32 256, 256
      %39 = vsyncadd [#allocation6], %s38
      %s40 = sshll.u32 [#allocation5], 4
      %s41 = int_to_ptr.vmem [resolvable:$true] %s40
      %46 = dma.hbm_to_vmem [thread:$0]  %s1, 256, %s41, [#allocation6], 128, 128, 8
    $region9: #{tpu_custom_call.1} parent=1 // pred_fallthru
      _
    // Predicated region
    $region10: #{tpu_custom_call.1} parent=1 // pred_check
      _
    $region11: #{tpu_custom_call.1} parent=1 // pred_check_branch
      %48 = sbr.rel (0) target = $region13
    $region12: #{tpu_custom_call.1} parent=1 // pred_region
      %s50 = ssub.s32 256, 256
      %51 = vsyncadd [#allocation6], %s50
      %s52 = sshll.u32 [#allocation7], 4
      %s53 = int_to_ptr.vmem [resolvable:$true] %s52
      %58 = dma.hbm_to_vmem [thread:$0]  %s2, 256, %s53, [#allocation6], 128, 128, 8
    $region13: #{tpu_custom_call.1} parent=1 // pred_fallthru
      _
    // Predicated region
    $region14: #{tpu_custom_call.1} parent=1 // pred_check
      _
    $region15: #{tpu_custom_call.1} parent=1 // pred_check_branch
      %60 = sbr.rel (0) target = $region17
    $region16: #{tpu_custom_call.1} parent=1 // pred_region
      %s62 = ssub.s32 256, 256
      %63 = vsyncadd [#allocation9], %s62
      %s64 = sshll.u32 [#allocation8], 4
      %s65 = int_to_ptr.vmem [resolvable:$true] %s64
      %70 = dma.hbm_to_vmem [thread:$0]  %s3, 256, %s65, [#allocation9], 64, 64, 4
    $region17: #{tpu_custom_call.1} parent=1 // pred_fallthru
      _
    // Predicated region
    $region18: #{tpu_custom_call.1} parent=1 // pred_check
      _
    $region19: #{tpu_custom_call.1} parent=1 // pred_check_branch
      %72 = sbr.rel (0) target = $region21
    $region20: #{tpu_custom_call.1} parent=1 // pred_region
      _
    $region21: #{tpu_custom_call.1} parent=1 // pred_fallthru
      _
    // Predicated region
    $region22: #{tpu_custom_call.1} parent=1 // pred_check
      _
    $region23: #{tpu_custom_call.1} parent=1 // pred_check_branch
      %74 = sbr.rel (0) target = $region25
    $region24: #{tpu_custom_call.1} parent=1 // pred_region
      %s76 = ssub.s32 16, 16
      %77 = vsyncadd [#allocation9], %s76
      %s79 = sshll.u32 [#allocation10], 4
      %s80 = int_to_ptr.vmem [resolvable:$true] %s79
      %82 = dma.hbm_to_vmem [thread:$0]  %s5, 16, %s80, [#allocation9]
    $region25: #{tpu_custom_call.1} parent=1 // pred_fallthru
      _
    // Predicated region
    $region26: #{tpu_custom_call.1} parent=1 // pred_check
      _
    $region27: #{tpu_custom_call.1} parent=1 // pred_check_branch
      %84 = sbr.rel (0) target = $region29
    $region28: #{tpu_custom_call.1} parent=1 // pred_region
      _
    $region29: #{tpu_custom_call.1} parent=1 // pred_fallthru
      _
    // Predicated region
    $region30: #{tpu_custom_call.1} parent=1 // pred_check
      _
    $region31: #{tpu_custom_call.1} parent=1 // pred_check_branch
      %86 = sbr.rel (0) target = $region33
    $region32: #{tpu_custom_call.1} parent=1 // pred_region
      _
    $region33: #{tpu_custom_call.1} parent=1 // pred_fallthru
      _
    // Predicated region
    $region34: #{tpu_custom_call.1} parent=1 // pred_check
      _
    $region35: #{tpu_custom_call.1} parent=1 // pred_check_branch
      %88 = sbr.rel (0) target = $region37
    $region36: #{tpu_custom_call.1} parent=1 // pred_region
      _
    $region37: #{tpu_custom_call.1} parent=1 // pred_fallthru
      _
    // Predicated region
    $region38: #{tpu_custom_call.1} parent=1 // pred_check
      _
    $region39: #{tpu_custom_call.1} parent=1 // pred_check_branch
      %90 = sbr.rel (0) target = $region41
    $region40: #{tpu_custom_call.1} parent=1 // pred_region
      _
    $region41: #{tpu_custom_call.1} parent=1 // pred_fallthru
      _
    // Predicated region
    $region42: #{tpu_custom_call.1} parent=1 // pred_check
      _
    $region43: #{tpu_custom_call.1} parent=1 // pred_check_branch
      %92 = sbr.rel (0) target = $region45
    $region44: #{tpu_custom_call.1} parent=1 // pred_region
      _
    $region45: #{tpu_custom_call.1} parent=1 // pred_fallthru
      _
    // Predicated region
    $region46: #{tpu_custom_call.1} parent=1 // pred_check
      _
    $region47: #{tpu_custom_call.1} parent=1 // pred_check_branch
      %94 = sbr.rel (0) target = $region49
    $region48: #{tpu_custom_call.1} parent=1 // pred_region
      _
    $region49: #{tpu_custom_call.1} parent=1 // pred_fallthru
      _
    // Predicated region
    $region50: #{tpu_custom_call.1} parent=1 // pred_check
      _
    $region51: #{tpu_custom_call.1} parent=1 // pred_check_branch
      %96 = sbr.rel (0) target = $region53
    $region52: #{tpu_custom_call.1} parent=1 // pred_region
      _
    $region53: #{tpu_custom_call.1} parent=1 // pred_fallthru
      _
    // Predicated region
    $region54: #{tpu_custom_call.1} parent=1 // pred_check
      _
    $region55: #{tpu_custom_call.1} parent=1 // pred_check_branch
      %98 = sbr.rel (0) target = $region57
    $region56: #{tpu_custom_call.1} parent=1 // pred_region
      _
    $region57: #{tpu_custom_call.1} parent=1 // pred_fallthru
      _
    // Predicated region
    $region58: #{tpu_custom_call.1} parent=1 // pred_check
      _
    $region59: #{tpu_custom_call.1} parent=1 // pred_check_branch
      %100 = sbr.rel (0) target = $region61
    $region60: #{tpu_custom_call.1} parent=1 // pred_region
      %101 = dma.done [#allocation3], 256
    $region61: #{tpu_custom_call.1} parent=1 // pred_fallthru
      _
    // Predicated region
    $region62: #{tpu_custom_call.1} parent=1 // pred_check
      _
    $region63: #{tpu_custom_call.1} parent=1 // pred_check_branch
      %103 = sbr.rel (0) target = $region65
    $region64: #{tpu_custom_call.1} parent=1 // pred_region
      %104 = dma.done [#allocation6], 256
    $region65: #{tpu_custom_call.1} parent=1 // pred_fallthru
      _
    // Predicated region
    $region66: #{tpu_custom_call.1} parent=1 // pred_check
      _
    $region67: #{tpu_custom_call.1} parent=1 // pred_check_branch
      %106 = sbr.rel (0) target = $region69
    $region68: #{tpu_custom_call.1} parent=1 // pred_region
      %107 = dma.done [#allocation6], 256
    $region69: #{tpu_custom_call.1} parent=1 // pred_fallthru
      _
    // Predicated region
    $region70: #{tpu_custom_call.1} parent=1 // pred_check
      _
    $region71: #{tpu_custom_call.1} parent=1 // pred_check_branch
      %109 = sbr.rel (0) target = $region73
    $region72: #{tpu_custom_call.1} parent=1 // pred_region
      %110 = dma.done [#allocation9], 256
    $region73: #{tpu_custom_call.1} parent=1 // pred_fallthru
      _
    // Predicated region
    $region74: #{tpu_custom_call.1} parent=1 // pred_check
      _
    $region75: #{tpu_custom_call.1} parent=1 // pred_check_branch
      %112 = sbr.rel (0) target = $region77
    $region76: #{tpu_custom_call.1} parent=1 // pred_region
      %113 = dma.done [#allocation9], 16
    $region77: #{tpu_custom_call.1} parent=1 // pred_fallthru
      _
    %v115 = vld [vmem:[#allocation2] sm:$0xff]
    %v116 = vld [vmem:[#allocation2 + $0x8] sm:$0xff]
    %v117 = vld [vmem:[#allocation7] sm:$0xff]
    %v118 = vld [vmem:[#allocation7 + $0x8] sm:$0xff]
    %v119 = vpack.c.bf16 %v116, %v115
    %v120 = vld [vmem:[#allocation8] sm:$0xf]
    %v121 = vld [vmem:[#allocation8 + $0x4] sm:$0xf]
    %v122 = vld [vmem:[#allocation8 + $0x8] sm:$0xf]
    %v123 = vld [vmem:[#allocation8 + $0xc] sm:$0xf]
    %v128 = vunpack.c.l.b16 %v120
    %v129 = vunpack.c.l.b16 %v121
    %v130 = vunpack.c.l.b16 %v122
    %v131 = vunpack.c.l.b16 %v123
    %v132 = vpack.c.b16 %v129, %v128
    %v133 = vpack.c.b16 %v131, %v130
    %vm136 = vcmask 261120
    %v138 = vsel %vm136, %v119, 0
    %140 = vmatprep.subr.bf16.mxu0 0
    %141 = vmatpush1.bf16.msra.mxu0 0
    %142 = vmatprep.subr.bf16.mxu0 0
    %143 = vmatpush1.bf16.msra.mxu0 0
    %144 = vmatprep.subr.bf16.mxu0 0
    %145 = vmatpush1.bf16.msra.mxu0 0
    %146 = vmatprep.subr.bf16.mxu0 0
    %147 = vmatpush1.bf16.msra.mxu0 0
    %148 = vmatprep.subr.bf16.mxu0 0
    %149 = vmatpush1.bf16.msra.mxu0 0
    %150 = vmatprep.subr.bf16.mxu0 0
    %151 = vmatpush1.bf16.msra.mxu0 0
    %152 = vmatprep.subr.bf16.mxu0 0
    %153 = vmatpush1.bf16.msra.mxu0 %v133
    %154 = vmatprep.subr.bf16.mxu0 0
    %155 = vmatpush1.bf16.msra.mxu0 %v132
    %156 = vmatprep.subr.bf16.mxu0 0
    %157 = vmatpush2.bf16.msra.mxu0 0
    %158 = vmatprep.subr.bf16.mxu0 0
    %159 = vmatpush2.bf16.msra.mxu0 0
    %160 = vmatprep.subr.bf16.mxu0 0
    %161 = vmatpush2.bf16.msra.mxu0 0
    %162 = vmatprep.subr.bf16.mxu0 0
    %163 = vmatpush2.bf16.msra.mxu0 0
    %164 = vmatprep.subr.bf16.mxu0 0
    %165 = vmatpush2.bf16.msra.mxu0 0
    %166 = vmatprep.subr.bf16.mxu0 0
    %167 = vmatpush2.bf16.msra.mxu0 0
    %168 = vmatprep.subr.bf16.mxu0 0
    %169 = vmatpush2.bf16.msra.mxu0 0
    %170 = vmatprep.subr.bf16.mxu0 0
    %171 = vmatpush2.bf16.msra.mxu0 0
    %172 = vmatprep.mubr.bf16.mxu0 0
    %173 = vmatmul.mubr.bf16.gmra.mxu0 %v138
    %v174 = vpop.f32.mrf.mxu0
    %v175 = vadd.f32 %v115, %v174
    %v176 = vpop.f32.mrf.mxu0
    %v177 = vpop.f32.mrf.mxu0
    %v178 = vadd.f32 %v116, %v177
    %v179 = vpop.f32.mrf.mxu0
    %180 = vdwg.mxu0
    %v181 = vld [vmem:[#allocation5] sm:$0xff]
    %v182 = vld [vmem:[#allocation5 + $0x8] sm:$0xff]
    %v183 = vadd.f32 %v175, %v181
    %v184 = vadd.f32 %v178, %v182
    %v185 = vsel %vm136, %v183, 0.0
    %186 = vadd.xlane.f32.xlu0 %v185
    %v187 = vpop.xlane.xlu0 %186
    %v188 = vsel %vm136, %v184, 0.0
    %189 = vadd.xlane.f32.xlu0 %v188
    %v190 = vpop.xlane.xlu0 %189
    %v191 = vrcp.pop 32.0
    %v192 = vmul.f32 %v187, %v191
    %v193 = vmul.f32 %v190, %v191
    %v194 = vmul.f32 %v183, %v183
    %v195 = vmul.f32 %v184, %v184
    %v196 = vsel %vm136, %v194, 0.0
    %197 = vadd.xlane.f32.xlu0 %v196
    %v198 = vpop.xlane.xlu0 %197
    %v199 = vsel %vm136, %v195, 0.0
    %200 = vadd.xlane.f32.xlu0 %v199
    %v201 = vpop.xlane.xlu0 %200
    %v202 = vmul.f32 %v198, %v191
    %v203 = vmul.f32 %v201, %v191
    %v204 = vmul.f32 %v192, %v192
    %v205 = vmul.f32 %v193, %v193
    %v206 = vsub.f32 %v202, %v204
    %v207 = vsub.f32 %v203, %v205
    %v208 = vmax.f32 %v206, 0.0
    %v209 = vmax.f32 %v207, 0.0
    %v210 = vsub.f32 %v183, %v192
    %v211 = vsub.f32 %v184, %v193
    %v212 = vadd.f32 %v208, 1e-12
    %v213 = vadd.f32 %v209, 1e-12
    %v214 = vrsqrt.pop %v212
    %v215 = vrsqrt.pop %v213
    %v216 = vmul.f32 %v210, %v214
    %v217 = vmul.f32 %v211, %v215
    %v218 = vld [vmem:[%s4] sm:$0x1]
    %v220 = vlaneseq
    %v221 = vshrl.u32 %v220, 7
    %v222 = vsub.s32 0, %v221
    %v223 = vrot.slane %v218, %v222
    %v225 = vmul.f32 %v216, %v223
    %v226 = vmul.f32 %v217, %v223
    %v227 = vld [vmem:[#allocation10] sm:$0x1]
    %v229 = vlaneseq
    %v230 = vshrl.u32 %v229, 7
    %v231 = vsub.s32 0, %v230
    %v232 = vrot.slane %v227, %v231
    %v234 = vadd.f32 %v225, %v232
    %v235 = vadd.f32 %v226, %v232
    %v236 = vsel %vm136, %v234, 0.0
    %237 = vadd.xlane.f32.xlu0 %v236
    %v238 = vpop.xlane.xlu0 %237
    %v239 = vsel %vm136, %v235, 0.0
    %240 = vadd.xlane.f32.xlu0 %v239
    %v241 = vpop.xlane.xlu0 %240
    %v242 = vmul.f32 %v238, %v191
    %v243 = vmul.f32 %v241, %v191
    %v244 = vmul.f32 %v234, %v234
    %v245 = vmul.f32 %v235, %v235
    %v246 = vsel %vm136, %v244, 0.0
    %247 = vadd.xlane.f32.xlu0 %v246
    %v248 = vpop.xlane.xlu0 %247
    %v249 = vsel %vm136, %v245, 0.0
    %250 = vadd.xlane.f32.xlu0 %v249
    %v251 = vpop.xlane.xlu0 %250
    %v252 = vmul.f32 %v248, %v191
    %v253 = vmul.f32 %v251, %v191
    %v254 = vmul.f32 %v242, %v242
    %v255 = vmul.f32 %v243, %v243
    %v256 = vsub.f32 %v252, %v254
    %v257 = vsub.f32 %v253, %v255
    %v258 = vmax.f32 %v256, 0.0
    %v259 = vmax.f32 %v257, 0.0
    %v260 = vsub.f32 %v234, %v242
    %v261 = vsub.f32 %v235, %v243
    %v262 = vadd.f32 %v258, 1e-05
    %v263 = vadd.f32 %v259, 1e-05
    %v264 = vrsqrt.pop %v262
    %v265 = vrsqrt.pop %v263
    %v266 = vmul.f32 %v260, %v264
    %v267 = vmul.f32 %v261, %v265
    %v268 = vpack.c.bf16 %v267, %v266
    %v269 = vld [vmem:[%s6] sm:$0xf]
    %v270 = vld [vmem:[%s6 + $0x4] sm:$0xf]
    %v271 = vld [vmem:[%s6 + $0x8] sm:$0xf]
    %v272 = vld [vmem:[%s6 + $0xc] sm:$0xf]
    %v273 = vld [vmem:[%s7] sm:$0x1]
    %v275 = vlaneseq
    %v276 = vshrl.u32 %v275, 7
    %v277 = vsub.s32 0, %v276
    %v278 = vrot.slane %v273, %v277
    %v284 = vunpack.c.l.b16 %v269
    %v285 = vunpack.c.l.b16 %v270
    %v286 = vunpack.c.l.b16 %v271
    %v287 = vunpack.c.l.b16 %v272
    %v288 = vpack.c.b16 %v285, %v284
    %v289 = vpack.c.b16 %v287, %v286
    %v293 = vsel %vm136, %v268, 0
    %295 = vmatprep.subr.bf16.mxu0 0
    %296 = vmatpush1.bf16.msra.mxu0 0
    %297 = vmatprep.subr.bf16.mxu0 0
    %298 = vmatpush1.bf16.msra.mxu0 0
    %299 = vmatprep.subr.bf16.mxu0 0
    %300 = vmatpush1.bf16.msra.mxu0 0
    %301 = vmatprep.subr.bf16.mxu0 0
    %302 = vmatpush1.bf16.msra.mxu0 0
    %303 = vmatprep.subr.bf16.mxu0 0
    %304 = vmatpush1.bf16.msra.mxu0 0
    %305 = vmatprep.subr.bf16.mxu0 0
    %306 = vmatpush1.bf16.msra.mxu0 0
    %307 = vmatprep.subr.bf16.mxu0 0
    %308 = vmatpush1.bf16.msra.mxu0 %v289
    %309 = vmatprep.subr.bf16.mxu0 0
    %310 = vmatpush1.bf16.msra.mxu0 %v288
    %311 = vmatprep.subr.bf16.mxu0 0
    %312 = vmatpush2.bf16.msra.mxu0 0
    %313 = vmatprep.subr.bf16.mxu0 0
    %314 = vmatpush2.bf16.msra.mxu0 0
    %315 = vmatprep.subr.bf16.mxu0 0
    %316 = vmatpush2.bf16.msra.mxu0 0
    %317 = vmatprep.subr.bf16.mxu0 0
    %318 = vmatpush2.bf16.msra.mxu0 0
    %319 = vmatprep.subr.bf16.mxu0 0
    %320 = vmatpush2.bf16.msra.mxu0 0
    %321 = vmatprep.subr.bf16.mxu0 0
    %322 = vmatpush2.bf16.msra.mxu0 0
    %323 = vmatprep.subr.bf16.mxu0 0
    %324 = vmatpush2.bf16.msra.mxu0 0
    %325 = vmatprep.subr.bf16.mxu0 0
    %326 = vmatpush2.bf16.msra.mxu0 0
    %327 = vmatprep.mubr.bf16.mxu0 0
    %328 = vmatmul.mubr.bf16.gmra.mxu0 %v293
    %v329 = vpop.f32.mrf.mxu0
    %v330 = vadd.f32 %v278, %v329
    %v331 = vpop.f32.mrf.mxu0
    %v332 = vpop.f32.mrf.mxu0
    %v333 = vadd.f32 %v278, %v332
    %v334 = vpop.f32.mrf.mxu0
    %335 = vdwg.mxu0
    %v336 = vpack.c.bf16 %v333, %v330
    %338 = vrot.lane.b32.xlu0 %v336, 96
    %v339 = vpop.permute.xlu0 %338
    %vm340 = vcmask 64512
    %v342 = vsel %vm340, %v336, 0
    %v345 = vsel %vm340, %v339, 0
    %347 = vmatprep.subr.bf16.mxu0 0
    %348 = vmatpush1.bf16.xpose.msra.mxu0 0
    %349 = vmatprep.subr.bf16.mxu0 0
    %350 = vmatpush1.bf16.xpose.msra.mxu0 0
    %351 = vmatprep.subr.bf16.mxu0 0
    %352 = vmatpush1.bf16.xpose.msra.mxu0 0
    %353 = vmatprep.subr.bf16.mxu0 0
    %354 = vmatpush1.bf16.xpose.msra.mxu0 0
    %355 = vmatprep.subr.bf16.mxu0 0
    %356 = vmatpush1.bf16.xpose.msra.mxu0 0
    %357 = vmatprep.subr.bf16.mxu0 0
    %358 = vmatpush1.bf16.xpose.msra.mxu0 0
    %359 = vmatprep.subr.bf16.mxu0 0
    %360 = vmatpush1.bf16.xpose.msra.mxu0 0
    %361 = vmatprep.subr.bf16.mxu0 0
    %362 = vmatpush1.bf16.xpose.msra.mxu0 %v345
    %363 = vmatprep.subr.bf16.mxu0 0
    %364 = vmatpush2.bf16.xpose.msra.mxu0 0
    %365 = vmatprep.subr.bf16.mxu0 0
    %366 = vmatpush2.bf16.xpose.msra.mxu0 0
    %367 = vmatprep.subr.bf16.mxu0 0
    %368 = vmatpush2.bf16.xpose.msra.mxu0 0
    %369 = vmatprep.subr.bf16.mxu0 0
    %370 = vmatpush2.bf16.xpose.msra.mxu0 0
    %371 = vmatprep.subr.bf16.mxu0 0
    %372 = vmatpush2.bf16.xpose.msra.mxu0 0
    %373 = vmatprep.subr.bf16.mxu0 0
    %374 = vmatpush2.bf16.xpose.msra.mxu0 0
    %375 = vmatprep.subr.bf16.mxu0 0
    %376 = vmatpush2.bf16.xpose.msra.mxu0 0
    %377 = vmatprep.subr.bf16.mxu0 0
    %378 = vmatpush2.bf16.xpose.msra.mxu0 0
    %379 = vmatprep.mubr.bf16.mxu0 0
    %380 = vmatmul.mubr.bf16.gmra.mxu0 %v342
    %v381 = vpop.f32.mrf.mxu0
    %v382 = vadd.f32 0.0, %v381
    %v383 = vpop.f32.mrf.mxu0
    %v384 = vpop.f32.mrf.mxu0
    %v385 = vadd.f32 0.0, %v384
    %v386 = vpop.f32.mrf.mxu0
    %387 = vdwg.mxu0
    %v388 = vmul.f32 %v382, 0.35355338
    %v389 = vmul.f32 %v385, 0.35355338
    %v390 = vadd.f32 %v388, %v117
    %v391 = vadd.f32 %v389, %v118
    %vm392 = vcmask 130048
    %v393 = vsel %vm392, %v390, -inf
    %394 = vmax.xlane.f32.xlu0 %v393
    %v395 = vpop.xlane.xlu0 %394
    %v396 = vsel %vm392, %v391, -inf
    %397 = vmax.xlane.f32.xlu0 %v396
    %v398 = vpop.xlane.xlu0 %397
    %v399 = vsub.f32 %v390, %v395
    %v400 = vsub.f32 %v391, %v398
    %v401 = vmul.f32 %v399, 1.442695
    %v402 = vpow.pop %v401
    %v403 = vmul.f32 %v400, 1.442695
    %v404 = vpow.pop %v403
    %v405 = vsel %vm392, %v402, 0.0
    %406 = vadd.xlane.f32.xlu0 %v405
    %v407 = vpop.xlane.xlu0 %406
    %v408 = vsel %vm392, %v404, 0.0
    %409 = vadd.xlane.f32.xlu0 %v408
    %v410 = vpop.xlane.xlu0 %409
    %v411 = vrcp.pop %v407
    %v412 = vrcp.pop %v410
    %v413 = vmul.f32 %v402, %v411
    %v414 = vmul.f32 %v404, %v412
    %v415 = vpack.c.bf16 %v414, %v413
    %416 = vrot.lane.b32.xlu0 %v336, 64
    %v417 = vpop.permute.xlu0 %416
    %v420 = vsel %vm392, %v415, 0
    %422 = vmatprep.subr.bf16.mxu0 0
    %423 = vmatpush1.bf16.msra.mxu0 0
    %424 = vmatprep.subr.bf16.mxu0 0
    %425 = vmatpush1.bf16.msra.mxu0 0
    %426 = vmatprep.subr.bf16.mxu0 0
    %427 = vmatpush1.bf16.msra.mxu0 0
    %428 = vmatprep.subr.bf16.mxu0 0
    %429 = vmatpush1.bf16.msra.mxu0 0
    %430 = vmatprep.subr.bf16.mxu0 0
    %431 = vmatpush1.bf16.msra.mxu0 0
    %432 = vmatprep.subr.bf16.mxu0 0
    %433 = vmatpush1.bf16.msra.mxu0 0
    %434 = vmatprep.subr.bf16.mxu0 0
    %435 = vmatpush1.bf16.msra.mxu0 0
    %436 = vmatprep.subr.bf16.mxu0 0
    %437 = vmatpush1.bf16.msra.mxu0 %v417
    %438 = vmatprep.subr.bf16.mxu0 0
    %439 = vmatpush2.bf16.msra.mxu0 0
    %440 = vmatprep.subr.bf16.mxu0 0
    %441 = vmatpush2.bf16.msra.mxu0 0
    %442 = vmatprep.subr.bf16.mxu0 0
    %443 = vmatpush2.bf16.msra.mxu0 0
    %444 = vmatprep.subr.bf16.mxu0 0
    %445 = vmatpush2.bf16.msra.mxu0 0
    %446 = vmatprep.subr.bf16.mxu0 0
    %447 = vmatpush2.bf16.msra.mxu0 0
    %448 = vmatprep.subr.bf16.mxu0 0
    %449 = vmatpush2.bf16.msra.mxu0 0
    %450 = vmatprep.subr.bf16.mxu0 0
    %451 = vmatpush2.bf16.msra.mxu0 0
    %452 = vmatprep.subr.bf16.mxu0 0
    %453 = vmatpush2.bf16.msra.mxu0 0
    %454 = vmatprep.mubr.bf16.mxu0 0
    %455 = vmatmul.mubr.bf16.gmra.mxu0 %v420
    %v456 = vpop.f32.mrf.mxu0
    %v457 = vadd.f32 0.0, %v456
    %v458 = vpop.f32.mrf.mxu0
    %v459 = vpop.f32.mrf.mxu0
    %v460 = vadd.f32 0.0, %v459
    %v461 = vpop.f32.mrf.mxu0
    %462 = vdwg.mxu0
    %463 = vrot.lane.b32.xlu0 %v336, 120
    %v464 = vpop.permute.xlu0 %463
    %465 = vrot.lane.b32.xlu0 %v336, 88
    %v466 = vpop.permute.xlu0 %465
    %v468 = vsel %vm340, %v464, 0
    %v471 = vsel %vm340, %v466, 0
    %473 = vmatprep.subr.bf16.mxu0 0
    %474 = vmatpush1.bf16.xpose.msra.mxu0 0
    %475 = vmatprep.subr.bf16.mxu0 0
    %476 = vmatpush1.bf16.xpose.msra.mxu0 0
    %477 = vmatprep.subr.bf16.mxu0 0
    %478 = vmatpush1.bf16.xpose.msra.mxu0 0
    %479 = vmatprep.subr.bf16.mxu0 0
    %480 = vmatpush1.bf16.xpose.msra.mxu0 0
    %481 = vmatprep.subr.bf16.mxu0 0
    %482 = vmatpush1.bf16.xpose.msra.mxu0 0
    %483 = vmatprep.subr.bf16.mxu0 0
    %484 = vmatpush1.bf16.xpose.msra.mxu0 0
    %485 = vmatprep.subr.bf16.mxu0 0
    %486 = vmatpush1.bf16.xpose.msra.mxu0 0
    %487 = vmatprep.subr.bf16.mxu0 0
    %488 = vmatpush1.bf16.xpose.msra.mxu0 %v471
    %489 = vmatprep.subr.bf16.mxu0 0
    %490 = vmatpush2.bf16.xpose.msra.mxu0 0
    %491 = vmatprep.subr.bf16.mxu0 0
    %492 = vmatpush2.bf16.xpose.msra.mxu0 0
    %493 = vmatprep.subr.bf16.mxu0 0
    %494 = vmatpush2.bf16.xpose.msra.mxu0 0
    %495 = vmatprep.subr.bf16.mxu0 0
    %496 = vmatpush2.bf16.xpose.msra.mxu0 0
    %497 = vmatprep.subr.bf16.mxu0 0
    %498 = vmatpush2.bf16.xpose.msra.mxu0 0
    %499 = vmatprep.subr.bf16.mxu0 0
    %500 = vmatpush2.bf16.xpose.msra.mxu0 0
    %501 = vmatprep.subr.bf16.mxu0 0
    %502 = vmatpush2.bf16.xpose.msra.mxu0 0
    %503 = vmatprep.subr.bf16.mxu0 0
    %504 = vmatpush2.bf16.xpose.msra.mxu0 0
    %505 = vmatprep.mubr.bf16.mxu0 0
    %506 = vmatmul.mubr.bf16.gmra.mxu0 %v468
    %v507 = vpop.f32.mrf.mxu0
    %v508 = vadd.f32 0.0, %v507
    %v509 = vpop.f32.mrf.mxu0
    %v510 = vpop.f32.mrf.mxu0
    %v511 = vadd.f32 0.0, %v510
    %v512 = vpop.f32.mrf.mxu0
    %513 = vdwg.mxu0
    %v514 = vmul.f32 %v508, 0.35355338
    %v515 = vmul.f32 %v511, 0.35355338
    %v516 = vadd.f32 %v514, %v117
    %v517 = vadd.f32 %v515, %v118
    %v518 = vsel %vm392, %v516, -inf
    %519 = vmax.xlane.f32.xlu0 %v518
    %v520 = vpop.xlane.xlu0 %519
    %v521 = vsel %vm392, %v517, -inf
    %522 = vmax.xlane.f32.xlu0 %v521
    %v523 = vpop.xlane.xlu0 %522
    %v524 = vsub.f32 %v516, %v520
    %v525 = vsub.f32 %v517, %v523
    %v526 = vmul.f32 %v524, 1.442695
    %v527 = vpow.pop %v526
    %v528 = vmul.f32 %v525, 1.442695
    %v529 = vpow.pop %v528
    %v530 = vsel %vm392, %v527, 0.0
    %531 = vadd.xlane.f32.xlu0 %v530
    %v532 = vpop.xlane.xlu0 %531
    %v533 = vsel %vm392, %v529, 0.0
    %534 = vadd.xlane.f32.xlu0 %v533
    %v535 = vpop.xlane.xlu0 %534
    %v536 = vrcp.pop %v532
    %v537 = vrcp.pop %v535
    %v538 = vmul.f32 %v527, %v536
    %v539 = vmul.f32 %v529, %v537
    %v540 = vpack.c.bf16 %v539, %v538
    %541 = vrot.lane.b32.xlu0 %v336, 56
    %v542 = vpop.permute.xlu0 %541
    %v545 = vsel %vm392, %v540, 0
    %547 = vmatprep.subr.bf16.mxu0 0
    %548 = vmatpush1.bf16.msra.mxu0 0
    %549 = vmatprep.subr.bf16.mxu0 0
    %550 = vmatpush1.bf16.msra.mxu0 0
    %551 = vmatprep.subr.bf16.mxu0 0
    %552 = vmatpush1.bf16.msra.mxu0 0
    %553 = vmatprep.subr.bf16.mxu0 0
    %554 = vmatpush1.bf16.msra.mxu0 0
    %555 = vmatprep.subr.bf16.mxu0 0
    %556 = vmatpush1.bf16.msra.mxu0 0
    %557 = vmatprep.subr.bf16.mxu0 0
    %558 = vmatpush1.bf16.msra.mxu0 0
    %559 = vmatprep.subr.bf16.mxu0 0
    %560 = vmatpush1.bf16.msra.mxu0 0
    %561 = vmatprep.subr.bf16.mxu0 0
    %562 = vmatpush1.bf16.msra.mxu0 %v542
    %563 = vmatprep.subr.bf16.mxu0 0
    %564 = vmatpush2.bf16.msra.mxu0 0
    %565 = vmatprep.subr.bf16.mxu0 0
    %566 = vmatpush2.bf16.msra.mxu0 0
    %567 = vmatprep.subr.bf16.mxu0 0
    %568 = vmatpush2.bf16.msra.mxu0 0
    %569 = vmatprep.subr.bf16.mxu0 0
    %570 = vmatpush2.bf16.msra.mxu0 0
    %571 = vmatprep.subr.bf16.mxu0 0
    %572 = vmatpush2.bf16.msra.mxu0 0
    %573 = vmatprep.subr.bf16.mxu0 0
    %574 = vmatpush2.bf16.msra.mxu0 0
    %575 = vmatprep.subr.bf16.mxu0 0
    %576 = vmatpush2.bf16.msra.mxu0 0
    %577 = vmatprep.subr.bf16.mxu0 0
    %578 = vmatpush2.bf16.msra.mxu0 0
    %579 = vmatprep.mubr.bf16.mxu0 0
    %580 = vmatmul.mubr.bf16.gmra.mxu0 %v545
    %v581 = vpop.f32.mrf.mxu0
    %v582 = vadd.f32 0.0, %v581
    %v583 = vpop.f32.mrf.mxu0
    %v584 = vpop.f32.mrf.mxu0
    %v585 = vadd.f32 0.0, %v584
    %v586 = vpop.f32.mrf.mxu0
    %587 = vdwg.mxu0
    %588 = vrot.lane.b32.xlu0 %v336, 112
    %v589 = vpop.permute.xlu0 %588
    %590 = vrot.lane.b32.xlu0 %v336, 80
    %v591 = vpop.permute.xlu0 %590
    %v593 = vsel %vm340, %v589, 0
    %v596 = vsel %vm340, %v591, 0
    %598 = vmatprep.subr.bf16.mxu0 0
    %599 = vmatpush1.bf16.xpose.msra.mxu0 0
    %600 = vmatprep.subr.bf16.mxu0 0
    %601 = vmatpush1.bf16.xpose.msra.mxu0 0
    %602 = vmatprep.subr.bf16.mxu0 0
    %603 = vmatpush1.bf16.xpose.msra.mxu0 0
    %604 = vmatprep.subr.bf16.mxu0 0
    %605 = vmatpush1.bf16.xpose.msra.mxu0 0
    %606 = vmatprep.subr.bf16.mxu0 0
    %607 = vmatpush1.bf16.xpose.msra.mxu0 0
    %608 = vmatprep.subr.bf16.mxu0 0
    %609 = vmatpush1.bf16.xpose.msra.mxu0 0
    %610 = vmatprep.subr.bf16.mxu0 0
    %611 = vmatpush1.bf16.xpose.msra.mxu0 0
    %612 = vmatprep.subr.bf16.mxu0 0
    %613 = vmatpush1.bf16.xpose.msra.mxu0 %v596
    %614 = vmatprep.subr.bf16.mxu0 0
    %615 = vmatpush2.bf16.xpose.msra.mxu0 0
    %616 = vmatprep.subr.bf16.mxu0 0
    %617 = vmatpush2.bf16.xpose.msra.mxu0 0
    %618 = vmatprep.subr.bf16.mxu0 0
    %619 = vmatpush2.bf16.xpose.msra.mxu0 0
    %620 = vmatprep.subr.bf16.mxu0 0
    %621 = vmatpush2.bf16.xpose.msra.mxu0 0
    %622 = vmatprep.subr.bf16.mxu0 0
    %623 = vmatpush2.bf16.xpose.msra.mxu0 0
    %624 = vmatprep.subr.bf16.mxu0 0
    %625 = vmatpush2.bf16.xpose.msra.mxu0 0
    %626 = vmatprep.subr.bf16.mxu0 0
    %627 = vmatpush2.bf16.xpose.msra.mxu0 0
    %628 = vmatprep.subr.bf16.mxu0 0
    %629 = vmatpush2.bf16.xpose.msra.mxu0 0
    %630 = vmatprep.mubr.bf16.mxu0 0
    %631 = vmatmul.mubr.bf16.gmra.mxu0 %v593
    %v632 = vpop.f32.mrf.mxu0
    %v633 = vadd.f32 0.0, %v632
    %v634 = vpop.f32.mrf.mxu0
    %v635 = vpop.f32.mrf.mxu0
    %v636 = vadd.f32 0.0, %v635
    %v637 = vpop.f32.mrf.mxu0
    %638 = vdwg.mxu0
    %v639 = vmul.f32 %v633, 0.35355338
    %v640 = vmul.f32 %v636, 0.35355338
    %v641 = vadd.f32 %v639, %v117
    %v642 = vadd.f32 %v640, %v118
    %v643 = vsel %vm392, %v641, -inf
    %644 = vmax.xlane.f32.xlu0 %v643
    %v645 = vpop.xlane.xlu0 %644
    %v646 = vsel %vm392, %v642, -inf
    %647 = vmax.xlane.f32.xlu0 %v646
    %v648 = vpop.xlane.xlu0 %647
    %v649 = vsub.f32 %v641, %v645
    %v650 = vsub.f32 %v642, %v648
    %v651 = vmul.f32 %v649, 1.442695
    %v652 = vpow.pop %v651
    %v653 = vmul.f32 %v650, 1.442695
    %v654 = vpow.pop %v653
    %v655 = vsel %vm392, %v652, 0.0
    %656 = vadd.xlane.f32.xlu0 %v655
    %v657 = vpop.xlane.xlu0 %656
    %v658 = vsel %vm392, %v654, 0.0
    %659 = vadd.xlane.f32.xlu0 %v658
    %v660 = vpop.xlane.xlu0 %659
    %v661 = vrcp.pop %v657
    %v662 = vrcp.pop %v660
    %v663 = vmul.f32 %v652, %v661
    %v664 = vmul.f32 %v654, %v662
    %v665 = vpack.c.bf16 %v664, %v663
    %666 = vrot.lane.b32.xlu0 %v336, 48
    %v667 = vpop.permute.xlu0 %666
    %v670 = vsel %vm392, %v665, 0
    %672 = vmatprep.subr.bf16.mxu0 0
    %673 = vmatpush1.bf16.msra.mxu0 0
    %674 = vmatprep.subr.bf16.mxu0 0
    %675 = vmatpush1.bf16.msra.mxu0 0
    %676 = vmatprep.subr.bf16.mxu0 0
    %677 = vmatpush1.bf16.msra.mxu0 0
    %678 = vmatprep.subr.bf16.mxu0 0
    %679 = vmatpush1.bf16.msra.mxu0 0
    %680 = vmatprep.subr.bf16.mxu0 0
    %681 = vmatpush1.bf16.msra.mxu0 0
    %682 = vmatprep.subr.bf16.mxu0 0
    %683 = vmatpush1.bf16.msra.mxu0 0
    %684 = vmatprep.subr.bf16.mxu0 0
    %685 = vmatpush1.bf16.msra.mxu0 0
    %686 = vmatprep.subr.bf16.mxu0 0
    %687 = vmatpush1.bf16.msra.mxu0 %v667
    %688 = vmatprep.subr.bf16.mxu0 0
    %689 = vmatpush2.bf16.msra.mxu0 0
    %690 = vmatprep.subr.bf16.mxu0 0
    %691 = vmatpush2.bf16.msra.mxu0 0
    %692 = vmatprep.subr.bf16.mxu0 0
    %693 = vmatpush2.bf16.msra.mxu0 0
    %694 = vmatprep.subr.bf16.mxu0 0
    %695 = vmatpush2.bf16.msra.mxu0 0
    %696 = vmatprep.subr.bf16.mxu0 0
    %697 = vmatpush2.bf16.msra.mxu0 0
    %698 = vmatprep.subr.bf16.mxu0 0
    %699 = vmatpush2.bf16.msra.mxu0 0
    %700 = vmatprep.subr.bf16.mxu0 0
    %701 = vmatpush2.bf16.msra.mxu0 0
    %702 = vmatprep.subr.bf16.mxu0 0
    %703 = vmatpush2.bf16.msra.mxu0 0
    %704 = vmatprep.mubr.bf16.mxu0 0
    %705 = vmatmul.mubr.bf16.gmra.mxu0 %v670
    %v706 = vpop.f32.mrf.mxu0
    %v707 = vadd.f32 0.0, %v706
    %v708 = vpop.f32.mrf.mxu0
    %v709 = vpop.f32.mrf.mxu0
    %v710 = vadd.f32 0.0, %v709
    %v711 = vpop.f32.mrf.mxu0
    %712 = vdwg.mxu0
    %713 = vrot.lane.b32.xlu0 %v336, 104
    %v714 = vpop.permute.xlu0 %713
    %715 = vrot.lane.b32.xlu0 %v336, 72
    %v716 = vpop.permute.xlu0 %715
    %v718 = vsel %vm340, %v714, 0
    %v721 = vsel %vm340, %v716, 0
    %723 = vmatprep.subr.bf16.mxu0 0
    %724 = vmatpush1.bf16.xpose.msra.mxu0 0
    %725 = vmatprep.subr.bf16.mxu0 0
    %726 = vmatpush1.bf16.xpose.msra.mxu0 0
    %727 = vmatprep.subr.bf16.mxu0 0
    %728 = vmatpush1.bf16.xpose.msra.mxu0 0
    %729 = vmatprep.subr.bf16.mxu0 0
    %730 = vmatpush1.bf16.xpose.msra.mxu0 0
    %731 = vmatprep.subr.bf16.mxu0 0
    %732 = vmatpush1.bf16.xpose.msra.mxu0 0
    %733 = vmatprep.subr.bf16.mxu0 0
    %734 = vmatpush1.bf16.xpose.msra.mxu0 0
    %735 = vmatprep.subr.bf16.mxu0 0
    %736 = vmatpush1.bf16.xpose.msra.mxu0 0
    %737 = vmatprep.subr.bf16.mxu0 0
    %738 = vmatpush1.bf16.xpose.msra.mxu0 %v721
    %739 = vmatprep.subr.bf16.mxu0 0
    %740 = vmatpush2.bf16.xpose.msra.mxu0 0
    %741 = vmatprep.subr.bf16.mxu0 0
    %742 = vmatpush2.bf16.xpose.msra.mxu0 0
    %743 = vmatprep.subr.bf16.mxu0 0
    %744 = vmatpush2.bf16.xpose.msra.mxu0 0
    %745 = vmatprep.subr.bf16.mxu0 0
    %746 = vmatpush2.bf16.xpose.msra.mxu0 0
    %747 = vmatprep.subr.bf16.mxu0 0
    %748 = vmatpush2.bf16.xpose.msra.mxu0 0
    %749 = vmatprep.subr.bf16.mxu0 0
    %750 = vmatpush2.bf16.xpose.msra.mxu0 0
    %751 = vmatprep.subr.bf16.mxu0 0
    %752 = vmatpush2.bf16.xpose.msra.mxu0 0
    %753 = vmatprep.subr.bf16.mxu0 0
    %754 = vmatpush2.bf16.xpose.msra.mxu0 0
    %755 = vmatprep.mubr.bf16.mxu0 0
    %756 = vmatmul.mubr.bf16.gmra.mxu0 %v718
    %v757 = vpop.f32.mrf.mxu0
    %v758 = vadd.f32 0.0, %v757
    %v759 = vpop.f32.mrf.mxu0
    %v760 = vpop.f32.mrf.mxu0
    %v761 = vadd.f32 0.0, %v760
    %v762 = vpop.f32.mrf.mxu0
    %763 = vdwg.mxu0
    %v764 = vmul.f32 %v758, 0.35355338
    %v765 = vmul.f32 %v761, 0.35355338
    %v766 = vadd.f32 %v764, %v117
    %v767 = vadd.f32 %v765, %v118
    %v768 = vsel %vm392, %v766, -inf
    %769 = vmax.xlane.f32.xlu0 %v768
    %v770 = vpop.xlane.xlu0 %769
    %v771 = vsel %vm392, %v767, -inf
    %772 = vmax.xlane.f32.xlu0 %v771
    %v773 = vpop.xlane.xlu0 %772
    %v774 = vsub.f32 %v766, %v770
    %v775 = vsub.f32 %v767, %v773
    %v776 = vmul.f32 %v774, 1.442695
    %v777 = vpow.pop %v776
    %v778 = vmul.f32 %v775, 1.442695
    %v779 = vpow.pop %v778
    %v780 = vsel %vm392, %v777, 0.0
    %781 = vadd.xlane.f32.xlu0 %v780
    %v782 = vpop.xlane.xlu0 %781
    %v783 = vsel %vm392, %v779, 0.0
    %784 = vadd.xlane.f32.xlu0 %v783
    %v785 = vpop.xlane.xlu0 %784
    %v786 = vrcp.pop %v782
    %v787 = vrcp.pop %v785
    %v788 = vmul.f32 %v777, %v786
    %v789 = vmul.f32 %v779, %v787
    %v790 = vpack.c.bf16 %v789, %v788
    %791 = vrot.lane.b32.xlu0 %v336, 40
    %v792 = vpop.permute.xlu0 %791
    %v795 = vsel %vm392, %v790, 0
    %797 = vmatprep.subr.bf16.mxu0 0
    %798 = vmatpush1.bf16.msra.mxu0 0
    %799 = vmatprep.subr.bf16.mxu0 0
    %800 = vmatpush1.bf16.msra.mxu0 0
    %801 = vmatprep.subr.bf16.mxu0 0
    %802 = vmatpush1.bf16.msra.mxu0 0
    %803 = vmatprep.subr.bf16.mxu0 0
    %804 = vmatpush1.bf16.msra.mxu0 0
    %805 = vmatprep.subr.bf16.mxu0 0
    %806 = vmatpush1.bf16.msra.mxu0 0
    %807 = vmatprep.subr.bf16.mxu0 0
    %808 = vmatpush1.bf16.msra.mxu0 0
    %809 = vmatprep.subr.bf16.mxu0 0
    %810 = vmatpush1.bf16.msra.mxu0 0
    %811 = vmatprep.subr.bf16.mxu0 0
    %812 = vmatpush1.bf16.msra.mxu0 %v792
    %813 = vmatprep.subr.bf16.mxu0 0
    %814 = vmatpush2.bf16.msra.mxu0 0
    %815 = vmatprep.subr.bf16.mxu0 0
    %816 = vmatpush2.bf16.msra.mxu0 0
    %817 = vmatprep.subr.bf16.mxu0 0
    %818 = vmatpush2.bf16.msra.mxu0 0
    %819 = vmatprep.subr.bf16.mxu0 0
    %820 = vmatpush2.bf16.msra.mxu0 0
    %821 = vmatprep.subr.bf16.mxu0 0
    %822 = vmatpush2.bf16.msra.mxu0 0
    %823 = vmatprep.subr.bf16.mxu0 0
    %824 = vmatpush2.bf16.msra.mxu0 0
    %825 = vmatprep.subr.bf16.mxu0 0
    %826 = vmatpush2.bf16.msra.mxu0 0
    %827 = vmatprep.subr.bf16.mxu0 0
    %828 = vmatpush2.bf16.msra.mxu0 0
    %829 = vmatprep.mubr.bf16.mxu0 0
    %830 = vmatmul.mubr.bf16.gmra.mxu0 %v795
    %v831 = vpop.f32.mrf.mxu0
    %v832 = vadd.f32 0.0, %v831
    %v833 = vpop.f32.mrf.mxu0
    %v834 = vpop.f32.mrf.mxu0
    %v835 = vadd.f32 0.0, %v834
    %v836 = vpop.f32.mrf.mxu0
    %837 = vdwg.mxu0
    %840 = vrot.lane.b32.xlu0 %v582, 8
    %v841 = vpop.permute.xlu0 %840
    %842 = vrot.lane.b32.xlu0 %v585, 8
    %v843 = vpop.permute.xlu0 %842
    %848 = vrot.lane.b32.xlu0 %v707, 16
    %v849 = vpop.permute.xlu0 %848
    %850 = vrot.lane.b32.xlu0 %v710, 16
    %v851 = vpop.permute.xlu0 %850
    %856 = vrot.lane.b32.xlu0 %v832, 24
    %v857 = vpop.permute.xlu0 %856
    %858 = vrot.lane.b32.xlu0 %v835, 24
    %v859 = vpop.permute.xlu0 %858
    %v862 = vsel %vm340, %v457, %v841
    %v863 = vsel %vm340, %v460, %v843
    %v864 = vsel %vm392, %v862, %v849
    %v865 = vsel %vm392, %v863, %v851
    %vm866 = vcmask 195584
    %v867 = vsel %vm866, %v864, %v857
    %v868 = vsel %vm866, %v865, %v859
    %v869 = vpack.c.bf16 %v868, %v867
    %v870 = vld [vmem:[%s8] sm:$0xf]
    %v871 = vld [vmem:[%s8 + $0x4] sm:$0xf]
    %v872 = vld [vmem:[%s8 + $0x8] sm:$0xf]
    %v873 = vld [vmem:[%s8 + $0xc] sm:$0xf]
    %v874 = vld [vmem:[%s9] sm:$0x1]
    %v876 = vlaneseq
    %v877 = vshrl.u32 %v876, 7
    %v878 = vsub.s32 0, %v877
    %v879 = vrot.slane %v874, %v878
    %v885 = vunpack.c.l.b16 %v870
    %v886 = vunpack.c.l.b16 %v871
    %v887 = vunpack.c.l.b16 %v872
    %v888 = vunpack.c.l.b16 %v873
    %v889 = vpack.c.b16 %v886, %v885
    %v890 = vpack.c.b16 %v888, %v887
    %v894 = vsel %vm136, %v869, 0
    %896 = vmatprep.subr.bf16.mxu0 0
    %897 = vmatpush1.bf16.msra.mxu0 0
    %898 = vmatprep.subr.bf16.mxu0 0
    %899 = vmatpush1.bf16.msra.mxu0 0
    %900 = vmatprep.subr.bf16.mxu0 0
    %901 = vmatpush1.bf16.msra.mxu0 0
    %902 = vmatprep.subr.bf16.mxu0 0
    %903 = vmatpush1.bf16.msra.mxu0 0
    %904 = vmatprep.subr.bf16.mxu0 0
    %905 = vmatpush1.bf16.msra.mxu0 0
    %906 = vmatprep.subr.bf16.mxu0 0
    %907 = vmatpush1.bf16.msra.mxu0 0
    %908 = vmatprep.subr.bf16.mxu0 0
    %909 = vmatpush1.bf16.msra.mxu0 %v890
    %910 = vmatprep.subr.bf16.mxu0 0
    %911 = vmatpush1.bf16.msra.mxu0 %v889
    %912 = vmatprep.subr.bf16.mxu0 0
    %913 = vmatpush2.bf16.msra.mxu0 0
    %914 = vmatprep.subr.bf16.mxu0 0
    %915 = vmatpush2.bf16.msra.mxu0 0
    %916 = vmatprep.subr.bf16.mxu0 0
    %917 = vmatpush2.bf16.msra.mxu0 0
    %918 = vmatprep.subr.bf16.mxu0 0
    %919 = vmatpush2.bf16.msra.mxu0 0
    %920 = vmatprep.subr.bf16.mxu0 0
    %921 = vmatpush2.bf16.msra.mxu0 0
    %922 = vmatprep.subr.bf16.mxu0 0
    %923 = vmatpush2.bf16.msra.mxu0 0
    %924 = vmatprep.subr.bf16.mxu0 0
    %925 = vmatpush2.bf16.msra.mxu0 0
    %926 = vmatprep.subr.bf16.mxu0 0
    %927 = vmatpush2.bf16.msra.mxu0 0
    %928 = vmatprep.mubr.bf16.mxu0 0
    %929 = vmatmul.mubr.bf16.gmra.mxu0 %v894
    %v930 = vpop.f32.mrf.mxu0
    %v931 = vadd.f32 %v879, %v930
    %v932 = vpop.f32.mrf.mxu0
    %v933 = vpop.f32.mrf.mxu0
    %v934 = vadd.f32 %v879, %v933
    %v935 = vpop.f32.mrf.mxu0
    %936 = vdwg.mxu0
    %v937 = vadd.f32 %v234, %v931
    %v938 = vadd.f32 %v235, %v934
    %v939 = vsel %vm136, %v937, 0.0
    %940 = vadd.xlane.f32.xlu0 %v939
    %v941 = vpop.xlane.xlu0 %940
    %v942 = vsel %vm136, %v938, 0.0
    %943 = vadd.xlane.f32.xlu0 %v942
    %v944 = vpop.xlane.xlu0 %943
    %v945 = vmul.f32 %v941, %v191
    %v946 = vmul.f32 %v944, %v191
    %v947 = vmul.f32 %v937, %v937
    %v948 = vmul.f32 %v938, %v938
    %v949 = vsel %vm136, %v947, 0.0
    %950 = vadd.xlane.f32.xlu0 %v949
    %v951 = vpop.xlane.xlu0 %950
    %v952 = vsel %vm136, %v948, 0.0
    %953 = vadd.xlane.f32.xlu0 %v952
    %v954 = vpop.xlane.xlu0 %953
    %v955 = vmul.f32 %v951, %v191
    %v956 = vmul.f32 %v954, %v191
    %v957 = vmul.f32 %v945, %v945
    %v958 = vmul.f32 %v946, %v946
    %v959 = vsub.f32 %v955, %v957
    %v960 = vsub.f32 %v956, %v958
    %v961 = vmax.f32 %v959, 0.0
    %v962 = vmax.f32 %v960, 0.0
    %v963 = vsub.f32 %v937, %v945
    %v964 = vsub.f32 %v938, %v946
    %v965 = vadd.f32 %v961, 1e-05
    %v966 = vadd.f32 %v962, 1e-05
    %v967 = vrsqrt.pop %v965
    %v968 = vrsqrt.pop %v966
    %v969 = vmul.f32 %v963, %v967
    %v970 = vmul.f32 %v964, %v968
    %v971 = vpack.c.bf16 %v970, %v969
    %v972 = vld [vmem:[%s10] sm:$0xf]
    %v973 = vld [vmem:[%s10 + $0x4] sm:$0xf]
    %v974 = vld [vmem:[%s10 + $0x8] sm:$0xf]
    %v975 = vld [vmem:[%s10 + $0xc] sm:$0xf]
    %v976 = vld [vmem:[%s11] sm:$0x1]
    %v978 = vlaneseq
    %v979 = vshrl.u32 %v978, 7
    %v980 = vsub.s32 0, %v979
    %v981 = vrot.slane %v976, %v980
    %v987 = vunpack.c.l.b16 %v972
    %v988 = vunpack.c.l.b16 %v973
    %v989 = vunpack.c.l.b16 %v974
    %v990 = vunpack.c.l.b16 %v975
    %v991 = vpack.c.b16 %v988, %v987
    %v992 = vpack.c.b16 %v990, %v989
    %v996 = vsel %vm136, %v971, 0
    %998 = vmatprep.subr.bf16.mxu0 0
    %999 = vmatpush1.bf16.msra.mxu0 0
    %1000 = vmatprep.subr.bf16.mxu0 0
    %1001 = vmatpush1.bf16.msra.mxu0 0
    %1002 = vmatprep.subr.bf16.mxu0 0
    %1003 = vmatpush1.bf16.msra.mxu0 0
    %1004 = vmatprep.subr.bf16.mxu0 0
    %1005 = vmatpush1.bf16.msra.mxu0 0
    %1006 = vmatprep.subr.bf16.mxu0 0
    %1007 = vmatpush1.bf16.msra.mxu0 0
    %1008 = vmatprep.subr.bf16.mxu0 0
    %1009 = vmatpush1.bf16.msra.mxu0 0
    %1010 = vmatprep.subr.bf16.mxu0 0
    %1011 = vmatpush1.bf16.msra.mxu0 %v992
    %1012 = vmatprep.subr.bf16.mxu0 0
    %1013 = vmatpush1.bf16.msra.mxu0 %v991
    %1014 = vmatprep.subr.bf16.mxu0 0
    %1015 = vmatpush2.bf16.msra.mxu0 0
    %1016 = vmatprep.subr.bf16.mxu0 0
    %1017 = vmatpush2.bf16.msra.mxu0 0
    %1018 = vmatprep.subr.bf16.mxu0 0
    %1019 = vmatpush2.bf16.msra.mxu0 0
    %1020 = vmatprep.subr.bf16.mxu0 0
    %1021 = vmatpush2.bf16.msra.mxu0 0
    %1022 = vmatprep.subr.bf16.mxu0 0
    %1023 = vmatpush2.bf16.msra.mxu0 0
    %1024 = vmatprep.subr.bf16.mxu0 0
    %1025 = vmatpush2.bf16.msra.mxu0 0
    %1026 = vmatprep.subr.bf16.mxu0 0
    %1027 = vmatpush2.bf16.msra.mxu0 0
    %1028 = vmatprep.subr.bf16.mxu0 0
    %1029 = vmatpush2.bf16.msra.mxu0 0
    %1030 = vmatprep.mubr.bf16.mxu0 0
    %1031 = vmatmul.mubr.bf16.gmra.mxu0 %v996
    %v1032 = vpop.f32.mrf.mxu0
    %v1033 = vadd.f32 %v981, %v1032
    %v1034 = vpop.f32.mrf.mxu0
    %v1035 = vpop.f32.mrf.mxu0
    %v1036 = vadd.f32 %v981, %v1035
    %v1037 = vpop.f32.mrf.mxu0
    %1038 = vdwg.mxu0
    %v1039 = vmul.f32 %v1033, 0.5
    %v1040 = vmul.f32 %v1036, 0.5
    %v1041 = vmul.f32 %v1033, 0.044715
    %v1042 = vmul.f32 %v1036, 0.044715
    %v1043 = vmul.f32 %v1041, %v1033
    %v1044 = vmul.f32 %v1042, %v1036
    %v1045 = vmul.f32 %v1043, %v1033
    %v1046 = vmul.f32 %v1044, %v1036
    %v1047 = vadd.f32 %v1033, %v1045
    %v1048 = vadd.f32 %v1036, %v1046
    %v1049 = vmul.f32 %v1047, 0.7978846
    %v1050 = vmul.f32 %v1048, 0.7978846
    %v1051 = vtanh.pop %v1049
    %v1052 = vtanh.pop %v1050
    %v1053 = vadd.f32 %v1051, 1.0
    %v1054 = vadd.f32 %v1052, 1.0
    %v1055 = vmul.f32 %v1039, %v1053
    %v1056 = vmul.f32 %v1040, %v1054
    %v1057 = vpack.c.bf16 %v1056, %v1055
    %v1058 = vld [vmem:[%s12] sm:$0xf]
    %v1059 = vld [vmem:[%s12 + $0x4] sm:$0xf]
    %v1060 = vld [vmem:[%s12 + $0x8] sm:$0xf]
    %v1061 = vld [vmem:[%s12 + $0xc] sm:$0xf]
    %v1062 = vld [vmem:[%s12 + $0x10] sm:$0xf]
    %v1063 = vld [vmem:[%s12 + $0x14] sm:$0xf]
    %v1064 = vld [vmem:[%s12 + $0x18] sm:$0xf]
    %v1065 = vld [vmem:[%s12 + $0x1c] sm:$0xf]
    %v1066 = vld [vmem:[%s13] sm:$0x1]
    %v1068 = vlaneseq
    %v1069 = vshrl.u32 %v1068, 7
    %v1070 = vsub.s32 0, %v1069
    %v1071 = vrot.slane %v1066, %v1070
    %v1081 = vunpack.c.l.b16 %v1058
    %v1082 = vunpack.c.l.b16 %v1059
    %v1083 = vunpack.c.l.b16 %v1060
    %v1084 = vunpack.c.l.b16 %v1061
    %v1085 = vunpack.c.l.b16 %v1062
    %v1086 = vunpack.c.l.b16 %v1063
    %v1087 = vunpack.c.l.b16 %v1064
    %v1088 = vunpack.c.l.b16 %v1065
    %v1089 = vpack.c.b16 %v1082, %v1081
    %v1090 = vpack.c.b16 %v1084, %v1083
    %v1091 = vpack.c.b16 %v1086, %v1085
    %v1092 = vpack.c.b16 %v1088, %v1087
    %vm1097 = vcmask 523264
    %v1099 = vsel %vm1097, %v1057, 0
    %1101 = vmatprep.subr.bf16.mxu0 0
    %1102 = vmatpush1.bf16.msra.mxu0 0
    %1103 = vmatprep.subr.bf16.mxu0 0
    %1104 = vmatpush1.bf16.msra.mxu0 0
    %1105 = vmatprep.subr.bf16.mxu0 0
    %1106 = vmatpush1.bf16.msra.mxu0 0
    %1107 = vmatprep.subr.bf16.mxu0 0
    %1108 = vmatpush1.bf16.msra.mxu0 0
    %1109 = vmatprep.subr.bf16.mxu0 0
    %1110 = vmatpush1.bf16.msra.mxu0 %v1092
    %1111 = vmatprep.subr.bf16.mxu0 0
    %1112 = vmatpush1.bf16.msra.mxu0 %v1091
    %1113 = vmatprep.subr.bf16.mxu0 0
    %1114 = vmatpush1.bf16.msra.mxu0 %v1090
    %1115 = vmatprep.subr.bf16.mxu0 0
    %1116 = vmatpush1.bf16.msra.mxu0 %v1089
    %1117 = vmatprep.subr.bf16.mxu0 0
    %1118 = vmatpush2.bf16.msra.mxu0 0
    %1119 = vmatprep.subr.bf16.mxu0 0
    %1120 = vmatpush2.bf16.msra.mxu0 0
    %1121 = vmatprep.subr.bf16.mxu0 0
    %1122 = vmatpush2.bf16.msra.mxu0 0
    %1123 = vmatprep.subr.bf16.mxu0 0
    %1124 = vmatpush2.bf16.msra.mxu0 0
    %1125 = vmatprep.subr.bf16.mxu0 0
    %1126 = vmatpush2.bf16.msra.mxu0 0
    %1127 = vmatprep.subr.bf16.mxu0 0
    %1128 = vmatpush2.bf16.msra.mxu0 0
    %1129 = vmatprep.subr.bf16.mxu0 0
    %1130 = vmatpush2.bf16.msra.mxu0 0
    %1131 = vmatprep.subr.bf16.mxu0 0
    %1132 = vmatpush2.bf16.msra.mxu0 0
    %1133 = vmatprep.mubr.bf16.mxu0 0
    %1134 = vmatmul.mubr.bf16.gmra.mxu0 %v1099
    %v1135 = vpop.f32.mrf.mxu0
    %v1136 = vadd.f32 %v1071, %v1135
    %v1137 = vpop.f32.mrf.mxu0
    %v1138 = vpop.f32.mrf.mxu0
    %v1139 = vadd.f32 %v1071, %v1138
    %v1140 = vpop.f32.mrf.mxu0
    %1141 = vdwg.mxu0
    %v1142 = vadd.f32 %v937, %v1136
    %v1143 = vadd.f32 %v938, %v1139
    %v1144 = vsel %vm136, %v1142, 0.0
    %1145 = vadd.xlane.f32.xlu0 %v1144
    %v1146 = vpop.xlane.xlu0 %1145
    %v1147 = vsel %vm136, %v1143, 0.0
    %1148 = vadd.xlane.f32.xlu0 %v1147
    %v1149 = vpop.xlane.xlu0 %1148
    %v1150 = vmul.f32 %v1146, %v191
    %v1151 = vmul.f32 %v1149, %v191
    %v1152 = vmul.f32 %v1142, %v1142
    %v1153 = vmul.f32 %v1143, %v1143
    %v1154 = vsel %vm136, %v1152, 0.0
    %1155 = vadd.xlane.f32.xlu0 %v1154
    %v1156 = vpop.xlane.xlu0 %1155
    %v1157 = vsel %vm136, %v1153, 0.0
    %1158 = vadd.xlane.f32.xlu0 %v1157
    %v1159 = vpop.xlane.xlu0 %1158
    %v1160 = vmul.f32 %v1156, %v191
    %v1161 = vmul.f32 %v1159, %v191
    %v1162 = vmul.f32 %v1150, %v1150
    %v1163 = vmul.f32 %v1151, %v1151
    %v1164 = vsub.f32 %v1160, %v1162
    %v1165 = vsub.f32 %v1161, %v1163
    %v1166 = vmax.f32 %v1164, 0.0
    %v1167 = vmax.f32 %v1165, 0.0
    %v1168 = vsub.f32 %v1142, %v1150
    %v1169 = vsub.f32 %v1143, %v1151
    %v1170 = vadd.f32 %v1166, 1e-05
    %v1171 = vadd.f32 %v1167, 1e-05
    %v1172 = vrsqrt.pop %v1170
    %v1173 = vrsqrt.pop %v1171
    %v1174 = vmul.f32 %v1168, %v1172
    %v1175 = vmul.f32 %v1169, %v1173
    %v1176 = vpack.c.bf16 %v1175, %v1174
    %s1177 = scalar_lea.vmem %s6, 16
    %v1178 = vld [vmem:[%s1177] sm:$0xf]
    %v1179 = vld [vmem:[%s1177 + $0x4] sm:$0xf]
    %v1180 = vld [vmem:[%s1177 + $0x8] sm:$0xf]
    %v1181 = vld [vmem:[%s1177 + $0xc] sm:$0xf]
    %s1182 = scalar_lea.vmem %s7, 1
    %v1183 = vld [vmem:[%s1182] sm:$0x1]
    %v1185 = vlaneseq
    %v1186 = vshrl.u32 %v1185, 7
    %v1187 = vsub.s32 0, %v1186
    %v1188 = vrot.slane %v1183, %v1187
    %v1194 = vunpack.c.l.b16 %v1178
    %v1195 = vunpack.c.l.b16 %v1179
    %v1196 = vunpack.c.l.b16 %v1180
    %v1197 = vunpack.c.l.b16 %v1181
    %v1198 = vpack.c.b16 %v1195, %v1194
    %v1199 = vpack.c.b16 %v1197, %v1196
    %v1203 = vsel %vm136, %v1176, 0
    %1205 = vmatprep.subr.bf16.mxu0 0
    %1206 = vmatpush1.bf16.msra.mxu0 0
    %1207 = vmatprep.subr.bf16.mxu0 0
    %1208 = vmatpush1.bf16.msra.mxu0 0
    %1209 = vmatprep.subr.bf16.mxu0 0
    %1210 = vmatpush1.bf16.msra.mxu0 0
    %1211 = vmatprep.subr.bf16.mxu0 0
    %1212 = vmatpush1.bf16.msra.mxu0 0
    %1213 = vmatprep.subr.bf16.mxu0 0
    %1214 = vmatpush1.bf16.msra.mxu0 0
    %1215 = vmatprep.subr.bf16.mxu0 0
    %1216 = vmatpush1.bf16.msra.mxu0 0
    %1217 = vmatprep.subr.bf16.mxu0 0
    %1218 = vmatpush1.bf16.msra.mxu0 %v1199
    %1219 = vmatprep.subr.bf16.mxu0 0
    %1220 = vmatpush1.bf16.msra.mxu0 %v1198
    %1221 = vmatprep.subr.bf16.mxu0 0
    %1222 = vmatpush2.bf16.msra.mxu0 0
    %1223 = vmatprep.subr.bf16.mxu0 0
    %1224 = vmatpush2.bf16.msra.mxu0 0
    %1225 = vmatprep.subr.bf16.mxu0 0
    %1226 = vmatpush2.bf16.msra.mxu0 0
    %1227 = vmatprep.subr.bf16.mxu0 0
    %1228 = vmatpush2.bf16.msra.mxu0 0
    %1229 = vmatprep.subr.bf16.mxu0 0
    %1230 = vmatpush2.bf16.msra.mxu0 0
    %1231 = vmatprep.subr.bf16.mxu0 0
    %1232 = vmatpush2.bf16.msra.mxu0 0
    %1233 = vmatprep.subr.bf16.mxu0 0
    %1234 = vmatpush2.bf16.msra.mxu0 0
    %1235 = vmatprep.subr.bf16.mxu0 0
    %1236 = vmatpush2.bf16.msra.mxu0 0
    %1237 = vmatprep.mubr.bf16.mxu0 0
    %1238 = vmatmul.mubr.bf16.gmra.mxu0 %v1203
    %v1239 = vpop.f32.mrf.mxu0
    %v1240 = vadd.f32 %v1188, %v1239
    %v1241 = vpop.f32.mrf.mxu0
    %v1242 = vpop.f32.mrf.mxu0
    %v1243 = vadd.f32 %v1188, %v1242
    %v1244 = vpop.f32.mrf.mxu0
    %1245 = vdwg.mxu0
    %v1246 = vpack.c.bf16 %v1243, %v1240
    %1248 = vrot.lane.b32.xlu0 %v1246, 96
    %v1249 = vpop.permute.xlu0 %1248
    %v1251 = vsel %vm340, %v1246, 0
    %v1254 = vsel %vm340, %v1249, 0
    %1256 = vmatprep.subr.bf16.mxu0 0
    %1257 = vmatpush1.bf16.xpose.msra.mxu0 0
    %1258 = vmatprep.subr.bf16.mxu0 0
    %1259 = vmatpush1.bf16.xpose.msra.mxu0 0
    %1260 = vmatprep.subr.bf16.mxu0 0
    %1261 = vmatpush1.bf16.xpose.msra.mxu0 0
    %1262 = vmatprep.subr.bf16.mxu0 0
    %1263 = vmatpush1.bf16.xpose.msra.mxu0 0
    %1264 = vmatprep.subr.bf16.mxu0 0
    %1265 = vmatpush1.bf16.xpose.msra.mxu0 0
    %1266 = vmatprep.subr.bf16.mxu0 0
    %1267 = vmatpush1.bf16.xpose.msra.mxu0 0
    %1268 = vmatprep.subr.bf16.mxu0 0
    %1269 = vmatpush1.bf16.xpose.msra.mxu0 0
    %1270 = vmatprep.subr.bf16.mxu0 0
    %1271 = vmatpush1.bf16.xpose.msra.mxu0 %v1254
    %1272 = vmatprep.subr.bf16.mxu0 0
    %1273 = vmatpush2.bf16.xpose.msra.mxu0 0
    %1274 = vmatprep.subr.bf16.mxu0 0
    %1275 = vmatpush2.bf16.xpose.msra.mxu0 0
    %1276 = vmatprep.subr.bf16.mxu0 0
    %1277 = vmatpush2.bf16.xpose.msra.mxu0 0
    %1278 = vmatprep.subr.bf16.mxu0 0
    %1279 = vmatpush2.bf16.xpose.msra.mxu0 0
    %1280 = vmatprep.subr.bf16.mxu0 0
    %1281 = vmatpush2.bf16.xpose.msra.mxu0 0
    %1282 = vmatprep.subr.bf16.mxu0 0
    %1283 = vmatpush2.bf16.xpose.msra.mxu0 0
    %1284 = vmatprep.subr.bf16.mxu0 0
    %1285 = vmatpush2.bf16.xpose.msra.mxu0 0
    %1286 = vmatprep.subr.bf16.mxu0 0
    %1287 = vmatpush2.bf16.xpose.msra.mxu0 0
    %1288 = vmatprep.mubr.bf16.mxu0 0
    %1289 = vmatmul.mubr.bf16.gmra.mxu0 %v1251
    %v1290 = vpop.f32.mrf.mxu0
    %v1291 = vadd.f32 0.0, %v1290
    %v1292 = vpop.f32.mrf.mxu0
    %v1293 = vpop.f32.mrf.mxu0
    %v1294 = vadd.f32 0.0, %v1293
    %v1295 = vpop.f32.mrf.mxu0
    %1296 = vdwg.mxu0
    %v1297 = vmul.f32 %v1291, 0.35355338
    %v1298 = vmul.f32 %v1294, 0.35355338
    %v1299 = vadd.f32 %v1297, %v117
    %v1300 = vadd.f32 %v1298, %v118
    %v1301 = vsel %vm392, %v1299, -inf
    %1302 = vmax.xlane.f32.xlu0 %v1301
    %v1303 = vpop.xlane.xlu0 %1302
    %v1304 = vsel %vm392, %v1300, -inf
    %1305 = vmax.xlane.f32.xlu0 %v1304
    %v1306 = vpop.xlane.xlu0 %1305
    %v1307 = vsub.f32 %v1299, %v1303
    %v1308 = vsub.f32 %v1300, %v1306
    %v1309 = vmul.f32 %v1307, 1.442695
    %v1310 = vpow.pop %v1309
    %v1311 = vmul.f32 %v1308, 1.442695
    %v1312 = vpow.pop %v1311
    %v1313 = vsel %vm392, %v1310, 0.0
    %1314 = vadd.xlane.f32.xlu0 %v1313
    %v1315 = vpop.xlane.xlu0 %1314
    %v1316 = vsel %vm392, %v1312, 0.0
    %1317 = vadd.xlane.f32.xlu0 %v1316
    %v1318 = vpop.xlane.xlu0 %1317
    %v1319 = vrcp.pop %v1315
    %v1320 = vrcp.pop %v1318
    %v1321 = vmul.f32 %v1310, %v1319
    %v1322 = vmul.f32 %v1312, %v1320
    %v1323 = vpack.c.bf16 %v1322, %v1321
    %1324 = vrot.lane.b32.xlu0 %v1246, 64
    %v1325 = vpop.permute.xlu0 %1324
    %v1328 = vsel %vm392, %v1323, 0
    %1330 = vmatprep.subr.bf16.mxu0 0
    %1331 = vmatpush1.bf16.msra.mxu0 0
    %1332 = vmatprep.subr.bf16.mxu0 0
    %1333 = vmatpush1.bf16.msra.mxu0 0
    %1334 = vmatprep.subr.bf16.mxu0 0
    %1335 = vmatpush1.bf16.msra.mxu0 0
    %1336 = vmatprep.subr.bf16.mxu0 0
    %1337 = vmatpush1.bf16.msra.mxu0 0
    %1338 = vmatprep.subr.bf16.mxu0 0
    %1339 = vmatpush1.bf16.msra.mxu0 0
    %1340 = vmatprep.subr.bf16.mxu0 0
    %1341 = vmatpush1.bf16.msra.mxu0 0
    %1342 = vmatprep.subr.bf16.mxu0 0
    %1343 = vmatpush1.bf16.msra.mxu0 0
    %1344 = vmatprep.subr.bf16.mxu0 0
    %1345 = vmatpush1.bf16.msra.mxu0 %v1325
    %1346 = vmatprep.subr.bf16.mxu0 0
    %1347 = vmatpush2.bf16.msra.mxu0 0
    %1348 = vmatprep.subr.bf16.mxu0 0
    %1349 = vmatpush2.bf16.msra.mxu0 0
    %1350 = vmatprep.subr.bf16.mxu0 0
    %1351 = vmatpush2.bf16.msra.mxu0 0
    %1352 = vmatprep.subr.bf16.mxu0 0
    %1353 = vmatpush2.bf16.msra.mxu0 0
    %1354 = vmatprep.subr.bf16.mxu0 0
    %1355 = vmatpush2.bf16.msra.mxu0 0
    %1356 = vmatprep.subr.bf16.mxu0 0
    %1357 = vmatpush2.bf16.msra.mxu0 0
    %1358 = vmatprep.subr.bf16.mxu0 0
    %1359 = vmatpush2.bf16.msra.mxu0 0
    %1360 = vmatprep.subr.bf16.mxu0 0
    %1361 = vmatpush2.bf16.msra.mxu0 0
    %1362 = vmatprep.mubr.bf16.mxu0 0
    %1363 = vmatmul.mubr.bf16.gmra.mxu0 %v1328
    %v1364 = vpop.f32.mrf.mxu0
    %v1365 = vadd.f32 0.0, %v1364
    %v1366 = vpop.f32.mrf.mxu0
    %v1367 = vpop.f32.mrf.mxu0
    %v1368 = vadd.f32 0.0, %v1367
    %v1369 = vpop.f32.mrf.mxu0
    %1370 = vdwg.mxu0
    %1371 = vrot.lane.b32.xlu0 %v1246, 120
    %v1372 = vpop.permute.xlu0 %1371
    %1373 = vrot.lane.b32.xlu0 %v1246, 88
    %v1374 = vpop.permute.xlu0 %1373
    %v1376 = vsel %vm340, %v1372, 0
    %v1379 = vsel %vm340, %v1374, 0
    %1381 = vmatprep.subr.bf16.mxu0 0
    %1382 = vmatpush1.bf16.xpose.msra.mxu0 0
    %1383 = vmatprep.subr.bf16.mxu0 0
    %1384 = vmatpush1.bf16.xpose.msra.mxu0 0
    %1385 = vmatprep.subr.bf16.mxu0 0
    %1386 = vmatpush1.bf16.xpose.msra.mxu0 0
    %1387 = vmatprep.subr.bf16.mxu0 0
    %1388 = vmatpush1.bf16.xpose.msra.mxu0 0
    %1389 = vmatprep.subr.bf16.mxu0 0
    %1390 = vmatpush1.bf16.xpose.msra.mxu0 0
    %1391 = vmatprep.subr.bf16.mxu0 0
    %1392 = vmatpush1.bf16.xpose.msra.mxu0 0
    %1393 = vmatprep.subr.bf16.mxu0 0
    %1394 = vmatpush1.bf16.xpose.msra.mxu0 0
    %1395 = vmatprep.subr.bf16.mxu0 0
    %1396 = vmatpush1.bf16.xpose.msra.mxu0 %v1379
    %1397 = vmatprep.subr.bf16.mxu0 0
    %1398 = vmatpush2.bf16.xpose.msra.mxu0 0
    %1399 = vmatprep.subr.bf16.mxu0 0
    %1400 = vmatpush2.bf16.xpose.msra.mxu0 0
    %1401 = vmatprep.subr.bf16.mxu0 0
    %1402 = vmatpush2.bf16.xpose.msra.mxu0 0
    %1403 = vmatprep.subr.bf16.mxu0 0
    %1404 = vmatpush2.bf16.xpose.msra.mxu0 0
    %1405 = vmatprep.subr.bf16.mxu0 0
    %1406 = vmatpush2.bf16.xpose.msra.mxu0 0
    %1407 = vmatprep.subr.bf16.mxu0 0
    %1408 = vmatpush2.bf16.xpose.msra.mxu0 0
    %1409 = vmatprep.subr.bf16.mxu0 0
    %1410 = vmatpush2.bf16.xpose.msra.mxu0 0
    %1411 = vmatprep.subr.bf16.mxu0 0
    %1412 = vmatpush2.bf16.xpose.msra.mxu0 0
    %1413 = vmatprep.mubr.bf16.mxu0 0
    %1414 = vmatmul.mubr.bf16.gmra.mxu0 %v1376
    %v1415 = vpop.f32.mrf.mxu0
    %v1416 = vadd.f32 0.0, %v1415
    %v1417 = vpop.f32.mrf.mxu0
    %v1418 = vpop.f32.mrf.mxu0
    %v1419 = vadd.f32 0.0, %v1418
    %v1420 = vpop.f32.mrf.mxu0
    %1421 = vdwg.mxu0
    %v1422 = vmul.f32 %v1416, 0.35355338
    %v1423 = vmul.f32 %v1419, 0.35355338
    %v1424 = vadd.f32 %v1422, %v117
    %v1425 = vadd.f32 %v1423, %v118
    %v1426 = vsel %vm392, %v1424, -inf
    %1427 = vmax.xlane.f32.xlu0 %v1426
    %v1428 = vpop.xlane.xlu0 %1427
    %v1429 = vsel %vm392, %v1425, -inf
    %1430 = vmax.xlane.f32.xlu0 %v1429
    %v1431 = vpop.xlane.xlu0 %1430
    %v1432 = vsub.f32 %v1424, %v1428
    %v1433 = vsub.f32 %v1425, %v1431
    %v1434 = vmul.f32 %v1432, 1.442695
    %v1435 = vpow.pop %v1434
    %v1436 = vmul.f32 %v1433, 1.442695
    %v1437 = vpow.pop %v1436
    %v1438 = vsel %vm392, %v1435, 0.0
    %1439 = vadd.xlane.f32.xlu0 %v1438
    %v1440 = vpop.xlane.xlu0 %1439
    %v1441 = vsel %vm392, %v1437, 0.0
    %1442 = vadd.xlane.f32.xlu0 %v1441
    %v1443 = vpop.xlane.xlu0 %1442
    %v1444 = vrcp.pop %v1440
    %v1445 = vrcp.pop %v1443
    %v1446 = vmul.f32 %v1435, %v1444
    %v1447 = vmul.f32 %v1437, %v1445
    %v1448 = vpack.c.bf16 %v1447, %v1446
    %1449 = vrot.lane.b32.xlu0 %v1246, 56
    %v1450 = vpop.permute.xlu0 %1449
    %v1453 = vsel %vm392, %v1448, 0
    %1455 = vmatprep.subr.bf16.mxu0 0
    %1456 = vmatpush1.bf16.msra.mxu0 0
    %1457 = vmatprep.subr.bf16.mxu0 0
    %1458 = vmatpush1.bf16.msra.mxu0 0
    %1459 = vmatprep.subr.bf16.mxu0 0
    %1460 = vmatpush1.bf16.msra.mxu0 0
    %1461 = vmatprep.subr.bf16.mxu0 0
    %1462 = vmatpush1.bf16.msra.mxu0 0
    %1463 = vmatprep.subr.bf16.mxu0 0
    %1464 = vmatpush1.bf16.msra.mxu0 0
    %1465 = vmatprep.subr.bf16.mxu0 0
    %1466 = vmatpush1.bf16.msra.mxu0 0
    %1467 = vmatprep.subr.bf16.mxu0 0
    %1468 = vmatpush1.bf16.msra.mxu0 0
    %1469 = vmatprep.subr.bf16.mxu0 0
    %1470 = vmatpush1.bf16.msra.mxu0 %v1450
    %1471 = vmatprep.subr.bf16.mxu0 0
    %1472 = vmatpush2.bf16.msra.mxu0 0
    %1473 = vmatprep.subr.bf16.mxu0 0
    %1474 = vmatpush2.bf16.msra.mxu0 0
    %1475 = vmatprep.subr.bf16.mxu0 0
    %1476 = vmatpush2.bf16.msra.mxu0 0
    %1477 = vmatprep.subr.bf16.mxu0 0
    %1478 = vmatpush2.bf16.msra.mxu0 0
    %1479 = vmatprep.subr.bf16.mxu0 0
    %1480 = vmatpush2.bf16.msra.mxu0 0
    %1481 = vmatprep.subr.bf16.mxu0 0
    %1482 = vmatpush2.bf16.msra.mxu0 0
    %1483 = vmatprep.subr.bf16.mxu0 0
    %1484 = vmatpush2.bf16.msra.mxu0 0
    %1485 = vmatprep.subr.bf16.mxu0 0
    %1486 = vmatpush2.bf16.msra.mxu0 0
    %1487 = vmatprep.mubr.bf16.mxu0 0
    %1488 = vmatmul.mubr.bf16.gmra.mxu0 %v1453
    %v1489 = vpop.f32.mrf.mxu0
    %v1490 = vadd.f32 0.0, %v1489
    %v1491 = vpop.f32.mrf.mxu0
    %v1492 = vpop.f32.mrf.mxu0
    %v1493 = vadd.f32 0.0, %v1492
    %v1494 = vpop.f32.mrf.mxu0
    %1495 = vdwg.mxu0
    %1496 = vrot.lane.b32.xlu0 %v1246, 112
    %v1497 = vpop.permute.xlu0 %1496
    %1498 = vrot.lane.b32.xlu0 %v1246, 80
    %v1499 = vpop.permute.xlu0 %1498
    %v1501 = vsel %vm340, %v1497, 0
    %v1504 = vsel %vm340, %v1499, 0
    %1506 = vmatprep.subr.bf16.mxu0 0
    %1507 = vmatpush1.bf16.xpose.msra.mxu0 0
    %1508 = vmatprep.subr.bf16.mxu0 0
    %1509 = vmatpush1.bf16.xpose.msra.mxu0 0
    %1510 = vmatprep.subr.bf16.mxu0 0
    %1511 = vmatpush1.bf16.xpose.msra.mxu0 0
    %1512 = vmatprep.subr.bf16.mxu0 0
    %1513 = vmatpush1.bf16.xpose.msra.mxu0 0
    %1514 = vmatprep.subr.bf16.mxu0 0
    %1515 = vmatpush1.bf16.xpose.msra.mxu0 0
    %1516 = vmatprep.subr.bf16.mxu0 0
    %1517 = vmatpush1.bf16.xpose.msra.mxu0 0
    %1518 = vmatprep.subr.bf16.mxu0 0
    %1519 = vmatpush1.bf16.xpose.msra.mxu0 0
    %1520 = vmatprep.subr.bf16.mxu0 0
    %1521 = vmatpush1.bf16.xpose.msra.mxu0 %v1504
    %1522 = vmatprep.subr.bf16.mxu0 0
    %1523 = vmatpush2.bf16.xpose.msra.mxu0 0
    %1524 = vmatprep.subr.bf16.mxu0 0
    %1525 = vmatpush2.bf16.xpose.msra.mxu0 0
    %1526 = vmatprep.subr.bf16.mxu0 0
    %1527 = vmatpush2.bf16.xpose.msra.mxu0 0
    %1528 = vmatprep.subr.bf16.mxu0 0
    %1529 = vmatpush2.bf16.xpose.msra.mxu0 0
    %1530 = vmatprep.subr.bf16.mxu0 0
    %1531 = vmatpush2.bf16.xpose.msra.mxu0 0
    %1532 = vmatprep.subr.bf16.mxu0 0
    %1533 = vmatpush2.bf16.xpose.msra.mxu0 0
    %1534 = vmatprep.subr.bf16.mxu0 0
    %1535 = vmatpush2.bf16.xpose.msra.mxu0 0
    %1536 = vmatprep.subr.bf16.mxu0 0
    %1537 = vmatpush2.bf16.xpose.msra.mxu0 0
    %1538 = vmatprep.mubr.bf16.mxu0 0
    %1539 = vmatmul.mubr.bf16.gmra.mxu0 %v1501
    %v1540 = vpop.f32.mrf.mxu0
    %v1541 = vadd.f32 0.0, %v1540
    %v1542 = vpop.f32.mrf.mxu0
    %v1543 = vpop.f32.mrf.mxu0
    %v1544 = vadd.f32 0.0, %v1543
    %v1545 = vpop.f32.mrf.mxu0
    %1546 = vdwg.mxu0
    %v1547 = vmul.f32 %v1541, 0.35355338
    %v1548 = vmul.f32 %v1544, 0.35355338
    %v1549 = vadd.f32 %v1547, %v117
    %v1550 = vadd.f32 %v1548, %v118
    %v1551 = vsel %vm392, %v1549, -inf
    %1552 = vmax.xlane.f32.xlu0 %v1551
    %v1553 = vpop.xlane.xlu0 %1552
    %v1554 = vsel %vm392, %v1550, -inf
    %1555 = vmax.xlane.f32.xlu0 %v1554
    %v1556 = vpop.xlane.xlu0 %1555
    %v1557 = vsub.f32 %v1549, %v1553
    %v1558 = vsub.f32 %v1550, %v1556
    %v1559 = vmul.f32 %v1557, 1.442695
    %v1560 = vpow.pop %v1559
    %v1561 = vmul.f32 %v1558, 1.442695
    %v1562 = vpow.pop %v1561
    %v1563 = vsel %vm392, %v1560, 0.0
    %1564 = vadd.xlane.f32.xlu0 %v1563
    %v1565 = vpop.xlane.xlu0 %1564
    %v1566 = vsel %vm392, %v1562, 0.0
    %1567 = vadd.xlane.f32.xlu0 %v1566
    %v1568 = vpop.xlane.xlu0 %1567
    %v1569 = vrcp.pop %v1565
    %v1570 = vrcp.pop %v1568
    %v1571 = vmul.f32 %v1560, %v1569
    %v1572 = vmul.f32 %v1562, %v1570
    %v1573 = vpack.c.bf16 %v1572, %v1571
    %1574 = vrot.lane.b32.xlu0 %v1246, 48
    %v1575 = vpop.permute.xlu0 %1574
    %v1578 = vsel %vm392, %v1573, 0
    %1580 = vmatprep.subr.bf16.mxu0 0
    %1581 = vmatpush1.bf16.msra.mxu0 0
    %1582 = vmatprep.subr.bf16.mxu0 0
    %1583 = vmatpush1.bf16.msra.mxu0 0
    %1584 = vmatprep.subr.bf16.mxu0 0
    %1585 = vmatpush1.bf16.msra.mxu0 0
    %1586 = vmatprep.subr.bf16.mxu0 0
    %1587 = vmatpush1.bf16.msra.mxu0 0
    %1588 = vmatprep.subr.bf16.mxu0 0
    %1589 = vmatpush1.bf16.msra.mxu0 0
    %1590 = vmatprep.subr.bf16.mxu0 0
    %1591 = vmatpush1.bf16.msra.mxu0 0
    %1592 = vmatprep.subr.bf16.mxu0 0
    %1593 = vmatpush1.bf16.msra.mxu0 0
    %1594 = vmatprep.subr.bf16.mxu0 0
    %1595 = vmatpush1.bf16.msra.mxu0 %v1575
    %1596 = vmatprep.subr.bf16.mxu0 0
    %1597 = vmatpush2.bf16.msra.mxu0 0
    %1598 = vmatprep.subr.bf16.mxu0 0
    %1599 = vmatpush2.bf16.msra.mxu0 0
    %1600 = vmatprep.subr.bf16.mxu0 0
    %1601 = vmatpush2.bf16.msra.mxu0 0
    %1602 = vmatprep.subr.bf16.mxu0 0
    %1603 = vmatpush2.bf16.msra.mxu0 0
    %1604 = vmatprep.subr.bf16.mxu0 0
    %1605 = vmatpush2.bf16.msra.mxu0 0
    %1606 = vmatprep.subr.bf16.mxu0 0
    %1607 = vmatpush2.bf16.msra.mxu0 0
    %1608 = vmatprep.subr.bf16.mxu0 0
    %1609 = vmatpush2.bf16.msra.mxu0 0
    %1610 = vmatprep.subr.bf16.mxu0 0
    %1611 = vmatpush2.bf16.msra.mxu0 0
    %1612 = vmatprep.mubr.bf16.mxu0 0
    %1613 = vmatmul.mubr.bf16.gmra.mxu0 %v1578
    %v1614 = vpop.f32.mrf.mxu0
    %v1615 = vadd.f32 0.0, %v1614
    %v1616 = vpop.f32.mrf.mxu0
    %v1617 = vpop.f32.mrf.mxu0
    %v1618 = vadd.f32 0.0, %v1617
    %v1619 = vpop.f32.mrf.mxu0
    %1620 = vdwg.mxu0
    %1621 = vrot.lane.b32.xlu0 %v1246, 104
    %v1622 = vpop.permute.xlu0 %1621
    %1623 = vrot.lane.b32.xlu0 %v1246, 72
    %v1624 = vpop.permute.xlu0 %1623
    %v1626 = vsel %vm340, %v1622, 0
    %v1629 = vsel %vm340, %v1624, 0
    %1631 = vmatprep.subr.bf16.mxu0 0
    %1632 = vmatpush1.bf16.xpose.msra.mxu0 0
    %1633 = vmatprep.subr.bf16.mxu0 0
    %1634 = vmatpush1.bf16.xpose.msra.mxu0 0
    %1635 = vmatprep.subr.bf16.mxu0 0
    %1636 = vmatpush1.bf16.xpose.msra.mxu0 0
    %1637 = vmatprep.subr.bf16.mxu0 0
    %1638 = vmatpush1.bf16.xpose.msra.mxu0 0
    %1639 = vmatprep.subr.bf16.mxu0 0
    %1640 = vmatpush1.bf16.xpose.msra.mxu0 0
    %1641 = vmatprep.subr.bf16.mxu0 0
    %1642 = vmatpush1.bf16.xpose.msra.mxu0 0
    %1643 = vmatprep.subr.bf16.mxu0 0
    %1644 = vmatpush1.bf16.xpose.msra.mxu0 0
    %1645 = vmatprep.subr.bf16.mxu0 0
    %1646 = vmatpush1.bf16.xpose.msra.mxu0 %v1629
    %1647 = vmatprep.subr.bf16.mxu0 0
    %1648 = vmatpush2.bf16.xpose.msra.mxu0 0
    %1649 = vmatprep.subr.bf16.mxu0 0
    %1650 = vmatpush2.bf16.xpose.msra.mxu0 0
    %1651 = vmatprep.subr.bf16.mxu0 0
    %1652 = vmatpush2.bf16.xpose.msra.mxu0 0
    %1653 = vmatprep.subr.bf16.mxu0 0
    %1654 = vmatpush2.bf16.xpose.msra.mxu0 0
    %1655 = vmatprep.subr.bf16.mxu0 0
    %1656 = vmatpush2.bf16.xpose.msra.mxu0 0
    %1657 = vmatprep.subr.bf16.mxu0 0
    %1658 = vmatpush2.bf16.xpose.msra.mxu0 0
    %1659 = vmatprep.subr.bf16.mxu0 0
    %1660 = vmatpush2.bf16.xpose.msra.mxu0 0
    %1661 = vmatprep.subr.bf16.mxu0 0
    %1662 = vmatpush2.bf16.xpose.msra.mxu0 0
    %1663 = vmatprep.mubr.bf16.mxu0 0
    %1664 = vmatmul.mubr.bf16.gmra.mxu0 %v1626
    %v1665 = vpop.f32.mrf.mxu0
    %v1666 = vadd.f32 0.0, %v1665
    %v1667 = vpop.f32.mrf.mxu0
    %v1668 = vpop.f32.mrf.mxu0
    %v1669 = vadd.f32 0.0, %v1668
    %v1670 = vpop.f32.mrf.mxu0
    %1671 = vdwg.mxu0
    %v1672 = vmul.f32 %v1666, 0.35355338
    %v1673 = vmul.f32 %v1669, 0.35355338
    %v1674 = vadd.f32 %v1672, %v117
    %v1675 = vadd.f32 %v1673, %v118
    %v1676 = vsel %vm392, %v1674, -inf
    %1677 = vmax.xlane.f32.xlu0 %v1676
    %v1678 = vpop.xlane.xlu0 %1677
    %v1679 = vsel %vm392, %v1675, -inf
    %1680 = vmax.xlane.f32.xlu0 %v1679
    %v1681 = vpop.xlane.xlu0 %1680
    %v1682 = vsub.f32 %v1674, %v1678
    %v1683 = vsub.f32 %v1675, %v1681
    %v1684 = vmul.f32 %v1682, 1.442695
    %v1685 = vpow.pop %v1684
    %v1686 = vmul.f32 %v1683, 1.442695
    %v1687 = vpow.pop %v1686
    %v1688 = vsel %vm392, %v1685, 0.0
    %1689 = vadd.xlane.f32.xlu0 %v1688
    %v1690 = vpop.xlane.xlu0 %1689
    %v1691 = vsel %vm392, %v1687, 0.0
    %1692 = vadd.xlane.f32.xlu0 %v1691
    %v1693 = vpop.xlane.xlu0 %1692
    %v1694 = vrcp.pop %v1690
    %v1695 = vrcp.pop %v1693
    %v1696 = vmul.f32 %v1685, %v1694
    %v1697 = vmul.f32 %v1687, %v1695
    %v1698 = vpack.c.bf16 %v1697, %v1696
    %1699 = vrot.lane.b32.xlu0 %v1246, 40
    %v1700 = vpop.permute.xlu0 %1699
    %v1703 = vsel %vm392, %v1698, 0
    %1705 = vmatprep.subr.bf16.mxu0 0
    %1706 = vmatpush1.bf16.msra.mxu0 0
    %1707 = vmatprep.subr.bf16.mxu0 0
    %1708 = vmatpush1.bf16.msra.mxu0 0
    %1709 = vmatprep.subr.bf16.mxu0 0
    %1710 = vmatpush1.bf16.msra.mxu0 0
    %1711 = vmatprep.subr.bf16.mxu0 0
    %1712 = vmatpush1.bf16.msra.mxu0 0
    %1713 = vmatprep.subr.bf16.mxu0 0
    %1714 = vmatpush1.bf16.msra.mxu0 0
    %1715 = vmatprep.subr.bf16.mxu0 0
    %1716 = vmatpush1.bf16.msra.mxu0 0
    %1717 = vmatprep.subr.bf16.mxu0 0
    %1718 = vmatpush1.bf16.msra.mxu0 0
    %1719 = vmatprep.subr.bf16.mxu0 0
    %1720 = vmatpush1.bf16.msra.mxu0 %v1700
    %1721 = vmatprep.subr.bf16.mxu0 0
    %1722 = vmatpush2.bf16.msra.mxu0 0
    %1723 = vmatprep.subr.bf16.mxu0 0
    %1724 = vmatpush2.bf16.msra.mxu0 0
    %1725 = vmatprep.subr.bf16.mxu0 0
    %1726 = vmatpush2.bf16.msra.mxu0 0
    %1727 = vmatprep.subr.bf16.mxu0 0
    %1728 = vmatpush2.bf16.msra.mxu0 0
    %1729 = vmatprep.subr.bf16.mxu0 0
    %1730 = vmatpush2.bf16.msra.mxu0 0
    %1731 = vmatprep.subr.bf16.mxu0 0
    %1732 = vmatpush2.bf16.msra.mxu0 0
    %1733 = vmatprep.subr.bf16.mxu0 0
    %1734 = vmatpush2.bf16.msra.mxu0 0
    %1735 = vmatprep.subr.bf16.mxu0 0
    %1736 = vmatpush2.bf16.msra.mxu0 0
    %1737 = vmatprep.mubr.bf16.mxu0 0
    %1738 = vmatmul.mubr.bf16.gmra.mxu0 %v1703
    %v1739 = vpop.f32.mrf.mxu0
    %v1740 = vadd.f32 0.0, %v1739
    %v1741 = vpop.f32.mrf.mxu0
    %v1742 = vpop.f32.mrf.mxu0
    %v1743 = vadd.f32 0.0, %v1742
    %v1744 = vpop.f32.mrf.mxu0
    %1745 = vdwg.mxu0
    %1748 = vrot.lane.b32.xlu0 %v1490, 8
    %v1749 = vpop.permute.xlu0 %1748
    %1750 = vrot.lane.b32.xlu0 %v1493, 8
    %v1751 = vpop.permute.xlu0 %1750
    %1756 = vrot.lane.b32.xlu0 %v1615, 16
    %v1757 = vpop.permute.xlu0 %1756
    %1758 = vrot.lane.b32.xlu0 %v1618, 16
    %v1759 = vpop.permute.xlu0 %1758
    %1764 = vrot.lane.b32.xlu0 %v1740, 24
    %v1765 = vpop.permute.xlu0 %1764
    %1766 = vrot.lane.b32.xlu0 %v1743, 24
    %v1767 = vpop.permute.xlu0 %1766
    %v1770 = vsel %vm340, %v1365, %v1749
    %v1771 = vsel %vm340, %v1368, %v1751
    %v1772 = vsel %vm392, %v1770, %v1757
    %v1773 = vsel %vm392, %v1771, %v1759
    %v1774 = vsel %vm866, %v1772, %v1765
    %v1775 = vsel %vm866, %v1773, %v1767
    %v1776 = vpack.c.bf16 %v1775, %v1774
    %s1777 = scalar_lea.vmem %s8, 16
    %v1778 = vld [vmem:[%s1777] sm:$0xf]
    %v1779 = vld [vmem:[%s1777 + $0x4] sm:$0xf]
    %v1780 = vld [vmem:[%s1777 + $0x8] sm:$0xf]
    %v1781 = vld [vmem:[%s1777 + $0xc] sm:$0xf]
    %s1782 = scalar_lea.vmem %s9, 1
    %v1783 = vld [vmem:[%s1782] sm:$0x1]
    %v1785 = vlaneseq
    %v1786 = vshrl.u32 %v1785, 7
    %v1787 = vsub.s32 0, %v1786
    %v1788 = vrot.slane %v1783, %v1787
    %v1794 = vunpack.c.l.b16 %v1778
    %v1795 = vunpack.c.l.b16 %v1779
    %v1796 = vunpack.c.l.b16 %v1780
    %v1797 = vunpack.c.l.b16 %v1781
    %v1798 = vpack.c.b16 %v1795, %v1794
    %v1799 = vpack.c.b16 %v1797, %v1796
    %v1803 = vsel %vm136, %v1776, 0
    %1805 = vmatprep.subr.bf16.mxu0 0
    %1806 = vmatpush1.bf16.msra.mxu0 0
    %1807 = vmatprep.subr.bf16.mxu0 0
    %1808 = vmatpush1.bf16.msra.mxu0 0
    %1809 = vmatprep.subr.bf16.mxu0 0
    %1810 = vmatpush1.bf16.msra.mxu0 0
    %1811 = vmatprep.subr.bf16.mxu0 0
    %1812 = vmatpush1.bf16.msra.mxu0 0
    %1813 = vmatprep.subr.bf16.mxu0 0
    %1814 = vmatpush1.bf16.msra.mxu0 0
    %1815 = vmatprep.subr.bf16.mxu0 0
    %1816 = vmatpush1.bf16.msra.mxu0 0
    %1817 = vmatprep.subr.bf16.mxu0 0
    %1818 = vmatpush1.bf16.msra.mxu0 %v1799
    %1819 = vmatprep.subr.bf16.mxu0 0
    %1820 = vmatpush1.bf16.msra.mxu0 %v1798
    %1821 = vmatprep.subr.bf16.mxu0 0
    %1822 = vmatpush2.bf16.msra.mxu0 0
    %1823 = vmatprep.subr.bf16.mxu0 0
    %1824 = vmatpush2.bf16.msra.mxu0 0
    %1825 = vmatprep.subr.bf16.mxu0 0
    %1826 = vmatpush2.bf16.msra.mxu0 0
    %1827 = vmatprep.subr.bf16.mxu0 0
    %1828 = vmatpush2.bf16.msra.mxu0 0
    %1829 = vmatprep.subr.bf16.mxu0 0
    %1830 = vmatpush2.bf16.msra.mxu0 0
    %1831 = vmatprep.subr.bf16.mxu0 0
    %1832 = vmatpush2.bf16.msra.mxu0 0
    %1833 = vmatprep.subr.bf16.mxu0 0
    %1834 = vmatpush2.bf16.msra.mxu0 0
    %1835 = vmatprep.subr.bf16.mxu0 0
    %1836 = vmatpush2.bf16.msra.mxu0 0
    %1837 = vmatprep.mubr.bf16.mxu0 0
    %1838 = vmatmul.mubr.bf16.gmra.mxu0 %v1803
    %v1839 = vpop.f32.mrf.mxu0
    %v1840 = vadd.f32 %v1788, %v1839
    %v1841 = vpop.f32.mrf.mxu0
    %v1842 = vpop.f32.mrf.mxu0
    %v1843 = vadd.f32 %v1788, %v1842
    %v1844 = vpop.f32.mrf.mxu0
    %1845 = vdwg.mxu0
    %v1846 = vadd.f32 %v1142, %v1840
    %v1847 = vadd.f32 %v1143, %v1843
    %v1848 = vsel %vm136, %v1846, 0.0
    %1849 = vadd.xlane.f32.xlu0 %v1848
    %v1850 = vpop.xlane.xlu0 %1849
    %v1851 = vsel %vm136, %v1847, 0.0
    %1852 = vadd.xlane.f32.xlu0 %v1851
    %v1853 = vpop.xlane.xlu0 %1852
    %v1854 = vmul.f32 %v1850, %v191
    %v1855 = vmul.f32 %v1853, %v191
    %v1856 = vmul.f32 %v1846, %v1846
    %v1857 = vmul.f32 %v1847, %v1847
    %v1858 = vsel %vm136, %v1856, 0.0
    %1859 = vadd.xlane.f32.xlu0 %v1858
    %v1860 = vpop.xlane.xlu0 %1859
    %v1861 = vsel %vm136, %v1857, 0.0
    %1862 = vadd.xlane.f32.xlu0 %v1861
    %v1863 = vpop.xlane.xlu0 %1862
    %v1864 = vmul.f32 %v1860, %v191
    %v1865 = vmul.f32 %v1863, %v191
    %v1866 = vmul.f32 %v1854, %v1854
    %v1867 = vmul.f32 %v1855, %v1855
    %v1868 = vsub.f32 %v1864, %v1866
    %v1869 = vsub.f32 %v1865, %v1867
    %v1870 = vmax.f32 %v1868, 0.0
    %v1871 = vmax.f32 %v1869, 0.0
    %v1872 = vsub.f32 %v1846, %v1854
    %v1873 = vsub.f32 %v1847, %v1855
    %v1874 = vadd.f32 %v1870, 1e-05
    %v1875 = vadd.f32 %v1871, 1e-05
    %v1876 = vrsqrt.pop %v1874
    %v1877 = vrsqrt.pop %v1875
    %v1878 = vmul.f32 %v1872, %v1876
    %v1879 = vmul.f32 %v1873, %v1877
    %v1880 = vpack.c.bf16 %v1879, %v1878
    %s1881 = scalar_lea.vmem %s10, 16
    %v1882 = vld [vmem:[%s1881] sm:$0xf]
    %v1883 = vld [vmem:[%s1881 + $0x4] sm:$0xf]
    %v1884 = vld [vmem:[%s1881 + $0x8] sm:$0xf]
    %v1885 = vld [vmem:[%s1881 + $0xc] sm:$0xf]
    %s1886 = scalar_lea.vmem %s11, 1
    %v1887 = vld [vmem:[%s1886] sm:$0x1]
    %v1889 = vlaneseq
    %v1890 = vshrl.u32 %v1889, 7
    %v1891 = vsub.s32 0, %v1890
    %v1892 = vrot.slane %v1887, %v1891
    %v1898 = vunpack.c.l.b16 %v1882
    %v1899 = vunpack.c.l.b16 %v1883
    %v1900 = vunpack.c.l.b16 %v1884
    %v1901 = vunpack.c.l.b16 %v1885
    %v1902 = vpack.c.b16 %v1899, %v1898
    %v1903 = vpack.c.b16 %v1901, %v1900
    %v1907 = vsel %vm136, %v1880, 0
    %1909 = vmatprep.subr.bf16.mxu0 0
    %1910 = vmatpush1.bf16.msra.mxu0 0
    %1911 = vmatprep.subr.bf16.mxu0 0
    %1912 = vmatpush1.bf16.msra.mxu0 0
    %1913 = vmatprep.subr.bf16.mxu0 0
    %1914 = vmatpush1.bf16.msra.mxu0 0
    %1915 = vmatprep.subr.bf16.mxu0 0
    %1916 = vmatpush1.bf16.msra.mxu0 0
    %1917 = vmatprep.subr.bf16.mxu0 0
    %1918 = vmatpush1.bf16.msra.mxu0 0
    %1919 = vmatprep.subr.bf16.mxu0 0
    %1920 = vmatpush1.bf16.msra.mxu0 0
    %1921 = vmatprep.subr.bf16.mxu0 0
    %1922 = vmatpush1.bf16.msra.mxu0 %v1903
    %1923 = vmatprep.subr.bf16.mxu0 0
    %1924 = vmatpush1.bf16.msra.mxu0 %v1902
    %1925 = vmatprep.subr.bf16.mxu0 0
    %1926 = vmatpush2.bf16.msra.mxu0 0
    %1927 = vmatprep.subr.bf16.mxu0 0
    %1928 = vmatpush2.bf16.msra.mxu0 0
    %1929 = vmatprep.subr.bf16.mxu0 0
    %1930 = vmatpush2.bf16.msra.mxu0 0
    %1931 = vmatprep.subr.bf16.mxu0 0
    %1932 = vmatpush2.bf16.msra.mxu0 0
    %1933 = vmatprep.subr.bf16.mxu0 0
    %1934 = vmatpush2.bf16.msra.mxu0 0
    %1935 = vmatprep.subr.bf16.mxu0 0
    %1936 = vmatpush2.bf16.msra.mxu0 0
    %1937 = vmatprep.subr.bf16.mxu0 0
    %1938 = vmatpush2.bf16.msra.mxu0 0
    %1939 = vmatprep.subr.bf16.mxu0 0
    %1940 = vmatpush2.bf16.msra.mxu0 0
    %1941 = vmatprep.mubr.bf16.mxu0 0
    %1942 = vmatmul.mubr.bf16.gmra.mxu0 %v1907
    %v1943 = vpop.f32.mrf.mxu0
    %v1944 = vadd.f32 %v1892, %v1943
    %v1945 = vpop.f32.mrf.mxu0
    %v1946 = vpop.f32.mrf.mxu0
    %v1947 = vadd.f32 %v1892, %v1946
    %v1948 = vpop.f32.mrf.mxu0
    %1949 = vdwg.mxu0
    %v1950 = vmul.f32 %v1944, 0.5
    %v1951 = vmul.f32 %v1947, 0.5
    %v1952 = vmul.f32 %v1944, 0.044715
    %v1953 = vmul.f32 %v1947, 0.044715
    %v1954 = vmul.f32 %v1952, %v1944
    %v1955 = vmul.f32 %v1953, %v1947
    %v1956 = vmul.f32 %v1954, %v1944
    %v1957 = vmul.f32 %v1955, %v1947
    %v1958 = vadd.f32 %v1944, %v1956
    %v1959 = vadd.f32 %v1947, %v1957
    %v1960 = vmul.f32 %v1958, 0.7978846
    %v1961 = vmul.f32 %v1959, 0.7978846
    %v1962 = vtanh.pop %v1960
    %v1963 = vtanh.pop %v1961
    %v1964 = vadd.f32 %v1962, 1.0
    %v1965 = vadd.f32 %v1963, 1.0
    %v1966 = vmul.f32 %v1950, %v1964
    %v1967 = vmul.f32 %v1951, %v1965
    %v1968 = vpack.c.bf16 %v1967, %v1966
    %s1969 = scalar_lea.vmem %s12, 32
    %v1970 = vld [vmem:[%s1969] sm:$0xf]
    %v1971 = vld [vmem:[%s1969 + $0x4] sm:$0xf]
    %v1972 = vld [vmem:[%s1969 + $0x8] sm:$0xf]
    %v1973 = vld [vmem:[%s1969 + $0xc] sm:$0xf]
    %v1974 = vld [vmem:[%s1969 + $0x10] sm:$0xf]
    %v1975 = vld [vmem:[%s1969 + $0x14] sm:$0xf]
    %v1976 = vld [vmem:[%s1969 + $0x18] sm:$0xf]
    %v1977 = vld [vmem:[%s1969 + $0x1c] sm:$0xf]
    %s1978 = scalar_lea.vmem %s13, 1
    %v1979 = vld [vmem:[%s1978] sm:$0x1]
    %v1981 = vlaneseq
    %v1982 = vshrl.u32 %v1981, 7
    %v1983 = vsub.s32 0, %v1982
    %v1984 = vrot.slane %v1979, %v1983
    %v1994 = vunpack.c.l.b16 %v1970
    %v1995 = vunpack.c.l.b16 %v1971
    %v1996 = vunpack.c.l.b16 %v1972
    %v1997 = vunpack.c.l.b16 %v1973
    %v1998 = vunpack.c.l.b16 %v1974
    %v1999 = vunpack.c.l.b16 %v1975
    %v2000 = vunpack.c.l.b16 %v1976
    %v2001 = vunpack.c.l.b16 %v1977
    %v2002 = vpack.c.b16 %v1995, %v1994
    %v2003 = vpack.c.b16 %v1997, %v1996
    %v2004 = vpack.c.b16 %v1999, %v1998
    %v2005 = vpack.c.b16 %v2001, %v2000
    %v2011 = vsel %vm1097, %v1968, 0
    %2013 = vmatprep.subr.bf16.mxu0 0
    %2014 = vmatpush1.bf16.msra.mxu0 0
    %2015 = vmatprep.subr.bf16.mxu0 0
    %2016 = vmatpush1.bf16.msra.mxu0 0
    %2017 = vmatprep.subr.bf16.mxu0 0
    %2018 = vmatpush1.bf16.msra.mxu0 0
    %2019 = vmatprep.subr.bf16.mxu0 0
    %2020 = vmatpush1.bf16.msra.mxu0 0
    %2021 = vmatprep.subr.bf16.mxu0 0
    %2022 = vmatpush1.bf16.msra.mxu0 %v2005
    %2023 = vmatprep.subr.bf16.mxu0 0
    %2024 = vmatpush1.bf16.msra.mxu0 %v2004
    %2025 = vmatprep.subr.bf16.mxu0 0
    %2026 = vmatpush1.bf16.msra.mxu0 %v2003
    %2027 = vmatprep.subr.bf16.mxu0 0
    %2028 = vmatpush1.bf16.msra.mxu0 %v2002
    %2029 = vmatprep.subr.bf16.mxu0 0
    %2030 = vmatpush2.bf16.msra.mxu0 0
    %2031 = vmatprep.subr.bf16.mxu0 0
    %2032 = vmatpush2.bf16.msra.mxu0 0
    %2033 = vmatprep.subr.bf16.mxu0 0
    %2034 = vmatpush2.bf16.msra.mxu0 0
    %2035 = vmatprep.subr.bf16.mxu0 0
    %2036 = vmatpush2.bf16.msra.mxu0 0
    %2037 = vmatprep.subr.bf16.mxu0 0
    %2038 = vmatpush2.bf16.msra.mxu0 0
    %2039 = vmatprep.subr.bf16.mxu0 0
    %2040 = vmatpush2.bf16.msra.mxu0 0
    %2041 = vmatprep.subr.bf16.mxu0 0
    %2042 = vmatpush2.bf16.msra.mxu0 0
    %2043 = vmatprep.subr.bf16.mxu0 0
    %2044 = vmatpush2.bf16.msra.mxu0 0
    %2045 = vmatprep.mubr.bf16.mxu0 0
    %2046 = vmatmul.mubr.bf16.gmra.mxu0 %v2011
    %v2047 = vpop.f32.mrf.mxu0
    %v2048 = vadd.f32 %v1984, %v2047
    %v2049 = vpop.f32.mrf.mxu0
    %v2050 = vpop.f32.mrf.mxu0
    %v2051 = vadd.f32 %v1984, %v2050
    %v2052 = vpop.f32.mrf.mxu0
    %2053 = vdwg.mxu0
    %v2054 = vadd.f32 %v1846, %v2048
    %v2055 = vadd.f32 %v1847, %v2051
    %2056 = vst.msk [vmem:[#allocation11] sm:$0xff] %vm136, %v2054
    %2057 = vst.msk [vmem:[#allocation11 + $0x8] sm:$0xff] %vm136, %v2055
    // Predicated region
    $region78: #{tpu_custom_call.1} parent=1 // pred_check
      _
    $region79: #{tpu_custom_call.1} parent=1 // pred_check_branch
      %2059 = sbr.rel (0) target = $region81
    $region80: #{tpu_custom_call.1} parent=1 // pred_region
      %s2061 = ssub.s32 256, 256
      %2062 = vsyncadd [#allocation4], %s2061
      %s2063 = sshll.u32 [#allocation11], 4
      %s2064 = int_to_ptr.vmem [resolvable:$true] %s2063
      %2069 = dma.vmem_to_hbm [thread:$0]  %s2064, 256, %s14, [#allocation4], 128, 128, 8
    $region81: #{tpu_custom_call.1} parent=1 // pred_fallthru
      _
    // Predicated region
    $region82: #{tpu_custom_call.1} parent=1 // pred_check
      _
    $region83: #{tpu_custom_call.1} parent=1 // pred_check_branch
      %2071 = sbr.rel (0) target = $region85
    $region84: #{tpu_custom_call.1} parent=1 // pred_region
      %2072 = dma.done [#allocation4], 256
    $region85: #{tpu_custom_call.1} parent=1 // pred_fallthru
      _
    %2073 = vsyncpa [#allocation3], 1
    %2074 = vsyncpa [#allocation6], 1
    %2075 = vsyncpa [#allocation9], 1
    %2076 = vsyncpa [#allocation4], 1

</llo_original>
